<compile_context>
chip_gen: v7x
topology: tpu7x:2x2x1
jax: 0.10.0
libtpu: 0.0.40
codegen_flags: <defaults>
</compile_context>

<pallas_src>
import functools

import numpy as np
import jax
import jax.numpy as jnp
from jax.experimental import pallas as pl
from jax.experimental.pallas import tpu as pltpu

LANE = 128     # feature / hidden / class dims padded to a full lane width
TM = 16        # layer-1 target rows per grid step (bf16 sublane-pack multiple)
ROW_PAD = 16   # row padding multiple for the output block


def _round_up(x, m):
    return ((x + m - 1) // m) * m


# ----------------------------- Pallas kernel --------------------------------

def fused_graphsage_kernel(
        # scalar-prefetch CSR arrays (SMEM)
        rowptr0_ref, nbr0_ref, rowptr1_ref, nbr1_ref,
        # VMEM inputs
        xsrc_ref, xself_ref, deg0_ref, deg1_ref,
        w1n_ref, w1s_ref, b1_ref, w2n_ref, w2s_ref, b2_ref, wl_ref, bl_ref,
        # output
        out_ref,
        # VMEM scratch
        agg1_sc, h1_sc, agg2_sc,
        *, num_classes):
    f32, bf16 = jnp.float32, jnp.bfloat16
    i = pl.program_id(0)
    tm, fp = agg1_sc.shape
    t1p, hp = agg2_sc.shape
    base = i * tm

    # ---- layer 1: CSR segment-sum for this block of tm target rows ----------
    # (VPU adds over gathered rows; no dense adjacency, no zero-padded MXU work)
    def seg_sum_l1(t_local, carry):
        t = base + t_local

        def add_edge(e, acc):
            return acc + xsrc_ref[pl.ds(nbr0_ref[e], 1), :]

        acc = jax.lax.fori_loop(rowptr0_ref[t], rowptr0_ref[t + 1], add_edge,
                                jnp.zeros((1, fp), f32))
        agg1_sc[pl.ds(t_local, 1), :] = acc
        return carry

    jax.lax.fori_loop(0, tm, seg_sum_l1, 0)

    # mean = f32 sums * reciprocal(degree); reciprocal rides the EUP slot.
    inv0 = pl.reciprocal(jnp.maximum(deg0_ref[...], 1.0), approx=True)  # [tm,1]
    agg1 = agg1_sc[...] * inv0                                          # f32

    # layer-1 projection: two MXU pushes sharing one f32 accumulator (no concat)
    h1 = jnp.dot(agg1.astype(bf16), w1n_ref[...], preferred_element_type=f32)
    h1 = h1 + jnp.dot(xself_ref[...].astype(bf16), w1s_ref[...],
                      preferred_element_type=f32)
    h1 = jnp.maximum(h1 + b1_ref[...], 0.0)                             # f32
    h1_sc[pl.ds(pl.multiple_of(base, tm), tm), :] = h1

    # ---- last grid step: layer 2 + linear head + log_softmax ---------------
    @pl.when(i == pl.num_programs(0) - 1)
    def _():
        def seg_sum_l2(t, carry):
            def add_edge(e, acc):
                return acc + h1_sc[pl.ds(nbr1_ref[e], 1), :]

            acc = jax.lax.fori_loop(rowptr1_ref[t], rowptr1_ref[t + 1],
                                    add_edge, jnp.zeros((1, hp), f32))
            agg2_sc[pl.ds(t, 1), :] = acc
            return carry

        jax.lax.fori_loop(0, t1p, seg_sum_l2, 0)

        inv1 = pl.reciprocal(jnp.maximum(deg1_ref[...], 1.0), approx=True)
        agg2 = agg2_sc[...] * inv1
        # NeighborSampler convention: layer-2 targets are the first t1p rows of
        # layer-1's target ordering (asserted in the wrapper).
        h1_self = h1_sc[0:t1p, :]

        h2 = jnp.dot(agg2.astype(bf16), w2n_ref[...],
                     preferred_element_type=f32)
        h2 = h2 + jnp.dot(h1_self.astype(bf16), w2s_ref[...],
                          preferred_element_type=f32)
        h2 = jnp.maximum(h2 + b2_ref[...], 0.0)

        logits = jnp.dot(h2.astype(bf16), wl_ref[...],
                         preferred_element_type=f32)
        logits = jnp.maximum(logits + bl_ref[...], 0.0)

        # log_softmax over the first num_classes lanes; padded lanes masked.
        col = jax.lax.broadcasted_iota(jnp.int32, logits.shape, 1)
        masked = jnp.where(col < num_classes, logits, -1e30)
        m = jnp.max(masked, axis=-1, keepdims=True)
        lse = jnp.log(jnp.sum(jnp.exp(masked - m), axis=-1, keepdims=True)) + m
        # padded output rows/lanes hold garbage; the wrapper slices [:t1, :C].
        out_ref[...] = logits - lse


# --------------------------- wrapper (plain JAX) -----------------------------

def _pad2(a, rows, cols):
    r, c = a.shape
    return jnp.pad(a, ((0, rows - r), (0, cols - c)))


def _csr(edge_index, padded_targets):
    """Host-side CSR (rowptr / neighbor indices / f32 degree), sorted by target.

    Padded target rows get empty neighbor ranges and degree 0."""
    src = np.asarray(edge_index[0]).astype(np.int32)
    tgt = np.asarray(edge_index[1]).astype(np.int64)
    order = np.argsort(tgt, kind="stable")
    nbr = src[order]
    if nbr.size == 0:
        nbr = np.zeros((1,), np.int32)
    counts = np.bincount(tgt, minlength=padded_targets)
    rowptr = np.concatenate([[0], np.cumsum(counts)]).astype(np.int32)
    deg = counts.astype(np.float32).reshape(padded_targets, 1)
    return jnp.asarray(rowptr), jnp.asarray(nbr), jnp.asarray(deg)


def graphsage_forward(params, x_full, data_flow):
    """Fused forward pass for the 2-layer GraphSAGE (conv1 + 1 conv + lin)."""
    assert len(params["convs"]) == 1 and len(data_flow) == 2, \
        "fused kernel is written for num_layers=2"
    n_id, edge0, (s0, t0) = data_flow[0]
    _, edge1, (s1, t1) = data_flow[1]
    # NeighborSampler convention: layer-2 sources are exactly the layer-1
    # targets (same ordering) and layer-2 targets are the first t1 of them.
    assert s1 <= t0 and t1 <= s1

    num_classes = params["lin"]["w"].shape[1]
    fp = hp = cp = LANE
    t0p = _round_up(t0, TM)
    t1p = _round_up(t1, ROW_PAD)
    s0p = _round_up(s0, 8)
    assert t0p <= s0p
    nb = t0p // TM

    # CSR neighbor structure (host-side preprocessing, as NeighborSampler does)
    rowptr0, nbr0, deg0 = _csr(edge0, t0p)
    rowptr1, nbr1, deg1 = _csr(edge1, t1p)

    # node features: gathered + lane-padded, kept f32 for the VPU segment sums
    x_p = _pad2(x_full[n_id], s0p, fp)
    x_self = x_p[:t0p]

    # weights: separate neighbor/self projections, zero-padded, bf16 for MXU
    p1, p2, plin = params["conv1"], params["convs"][0], params["lin"]
    bf16 = jnp.bfloat16
    w1n = _pad2(p1["wn"], fp, hp).astype(bf16)
    w1s = _pad2(p1["ws"], fp, hp).astype(bf16)
    w2n = _pad2(p2["wn"], hp, hp).astype(bf16)
    w2s = _pad2(p2["ws"], hp, hp).astype(bf16)
    wl = _pad2(plin["w"], hp, cp).astype(bf16)
    b1 = _pad2(p1["b"], 1, hp)
    b2 = _pad2(p2["b"], 1, hp)
    bl = _pad2(plin["b"], 1, cp)

    vmem_inputs = (x_p, x_self, deg0, deg1,
                   w1n, w1s, b1, w2n, w2s, b2, wl, bl)

    e0 = int(nbr0.shape[0])
    e1 = int(nbr1.shape[0])
    flops = (2 * e0 * fp + 2 * e1 * hp          # CSR segment sums
             + 4 * t0p * fp * hp                # layer-1 neighbor + self dots
             + 4 * t1p * hp * hp                # layer-2 neighbor + self dots
             + 2 * t1p * hp * cp)               # head
    bytes_accessed = (sum(int(np.prod(a.shape)) * a.dtype.itemsize
                          for a in vmem_inputs)
                      + 4 * int(rowptr0.size + nbr0.size
                                + rowptr1.size + nbr1.size)
                      + t1p * cp * 4)
    cost = pl.CostEstimate(flops=flops,
                           transcendentals=t1p * cp + t1p + t0p + t1p,
                           bytes_accessed=bytes_accessed)

    grid_spec = pltpu.PrefetchScalarGridSpec(
        num_scalar_prefetch=4,                      # rowptr0, nbr0, rowptr1, nbr1
        grid=(nb,),
        in_specs=[
            pl.BlockSpec((s0p, fp), lambda i, *_: (0, 0)),  # full source feats
            pl.BlockSpec((TM, fp), lambda i, *_: (i, 0)),   # self rows (block)
            pl.BlockSpec((TM, 1), lambda i, *_: (i, 0)),    # degrees (block)
            pl.BlockSpec((t1p, 1), lambda i, *_: (0, 0)),   # layer-2 degrees
            pl.BlockSpec((fp, hp), lambda i, *_: (0, 0)),   # w1n
            pl.BlockSpec((fp, hp), lambda i, *_: (0, 0)),   # w1s
            pl.BlockSpec((1, hp), lambda i, *_: (0, 0)),    # b1
            pl.BlockSpec((hp, hp), lambda i, *_: (0, 0)),   # w2n
            pl.BlockSpec((hp, hp), lambda i, *_: (0, 0)),   # w2s
            pl.BlockSpec((1, hp), lambda i, *_: (0, 0)),    # b2
            pl.BlockSpec((hp, cp), lambda i, *_: (0, 0)),   # wl
            pl.BlockSpec((1, cp), lambda i, *_: (0, 0)),    # bl
        ],
        out_specs=pl.BlockSpec((t1p, cp), lambda i, *_: (0, 0)),
        scratch_shapes=[
            pltpu.VMEM((TM, fp), jnp.float32),     # per-block layer-1 sums
            pltpu.VMEM((t0p, hp), jnp.float32),    # h1, carried across steps
            pltpu.VMEM((t1p, hp), jnp.float32),    # layer-2 sums
        ],
    )

    out_pad = pl.pallas_call(
        functools.partial(fused_graphsage_kernel, num_classes=num_classes),
        out_shape=jax.ShapeDtypeStruct((t1p, cp), jnp.float32),
        grid_spec=grid_spec,
        compiler_params=pltpu.CompilerParams(
            # the grid axis carries h1 across steps (layer 2 + head run on the
            # last step), so it must stay sequential ("arbitrary").
            dimension_semantics=("arbitrary",),
            vmem_limit_bytes=32 * 1024 * 1024,
        ),
        cost_estimate=cost,
    )(rowptr0, nbr0, rowptr1, nbr1, *vmem_inputs)

    return out_pad[:t1, :num_classes]


def reference_forward(params, x_full, data_flow):
    """Pure-jnp reference: f32 segment-mean aggregation (exact 1/deg) and
    bf16-operand / f32-accumulate matmuls matching the kernel."""
    bf16 = jnp.bfloat16

    def mm(a, b):
        return jnp.dot(a.astype(bf16), b.astype(bf16),
                       preferred_element_type=jnp.float32)

    def sage_layer(x, edge_index, size, p):
        src, tgt = edge_index
        _, n_tgt = size
        agg = jnp.zeros((n_tgt, x.shape[1]), jnp.float32).at[tgt].add(x[src])
        deg = jnp.zeros((n_tgt, 1), jnp.float32).at[tgt, 0].add(1.0)
        agg = agg / jnp.maximum(deg, 1.0)
        h = mm(agg, p["wn"]) + mm(x[:n_tgt], p["ws"]) + p["b"]
        return jnp.maximum(h, 0.0)

    n_id, edge_index, size = data_flow[0]
    x = sage_layer(x_full[n_id], edge_index, size, params["conv1"])
    for i, p in enumerate(params["convs"]):
        _, edge_index, size = data_flow[i + 1]
        x = sage_layer(x, edge_index, size, p)
    h = jnp.maximum(mm(x, params["lin"]["w"]) + params["lin"]["b"], 0.0)
    return jax.nn.log_softmax(h, axis=-1)


def glorot(key, shape):
    lim = np.sqrt(6.0 / (shape[0] + shape[1]))
    return jax.random.uniform(key, shape, jnp.float32, -lim, lim)


# --------------------------------- main --------------------------------------

if __name__ == "__main__":
    key = jax.random.PRNGKey(0)
    keys = jax.random.split(key, 16)

    num_nodes_total = 256
    num_features = 16
    hidden = 32
    num_classes = 8

    params = {
        "conv1": {
            "wn": glorot(keys[0], (num_features, hidden)),
            "ws": glorot(keys[1], (num_features, hidden)),
            "b": jnp.zeros((1, hidden), jnp.float32),
        },
        "convs": [
            {
                "wn": glorot(keys[2], (hidden, hidden)),
                "ws": glorot(keys[3], (hidden, hidden)),
                "b": jnp.zeros((1, hidden), jnp.float32),
            }
        ],
        "lin": {
            "w": glorot(keys[4], (hidden, num_classes)),
            "b": jnp.zeros((1, num_classes), jnp.float32),
        },
    }

    x_full = jax.random.normal(keys[5], (num_nodes_total, num_features),
                               jnp.float32)

    # synthetic NeighborSampler-style data_flow (2 layers):
    #   block 0: 128 sampled source nodes -> 64 target nodes
    #   block 1: those 64 targets         -> first 16 of them
    s0, t0 = 128, 64
    s1, t1 = 64, 16
    n_id0 = jax.random.permutation(keys[6], num_nodes_total)[:s0]
    e0 = 512
    edge0 = jnp.stack([
        jax.random.randint(keys[7], (e0,), 0, s0),   # source idx (into gathered x)
        jax.random.randint(keys[8], (e0,), 0, t0),   # target idx
    ])
    e1 = 128
    edge1 = jnp.stack([
        jax.random.randint(keys[9], (e1,), 0, s1),
        jax.random.randint(keys[10], (e1,), 0, t1),
    ])
    data_flow = [
        (n_id0, edge0, (s0, t0)),
        (None, edge1, (s1, t1)),
    ]

    out = jax.block_until_ready(graphsage_forward(params, x_full, data_flow))
    ref = jax.block_until_ready(reference_forward(params, x_full, data_flow))

    assert out.shape == (t1, num_classes)
    # tolerance covers bf16 MXU operands + approx EUP reciprocal of the degree
    diff = np.max(np.abs(np.asarray(out) - np.asarray(ref)))
    assert np.allclose(np.asarray(out), np.asarray(ref),
                       atol=5e-2, rtol=5e-2), diff

    print("KERNEL_OK")
</pallas_src>

<mosaic_0001>
module attributes {stable_mosaic.version = 11 : i64} {
  func.func @fused_graphsage_kernel(%arg0: i32, %arg1: memref<65xi32, #tpu.memory_space<smem>>, %arg2: memref<512xi32, #tpu.memory_space<smem>>, %arg3: memref<17xi32, #tpu.memory_space<smem>>, %arg4: memref<128xi32, #tpu.memory_space<smem>>, %arg5: memref<128x128xf32, #tpu.memory_space<vmem>>, %arg6: memref<16x128xf32, #tpu.memory_space<vmem>>, %arg7: memref<16x1xf32, #tpu.memory_space<vmem>>, %arg8: memref<16x1xf32, #tpu.memory_space<vmem>>, %arg9: memref<128x128xbf16, #tpu.memory_space<vmem>>, %arg10: memref<128x128xbf16, #tpu.memory_space<vmem>>, %arg11: memref<1x128xf32, #tpu.memory_space<vmem>>, %arg12: memref<128x128xbf16, #tpu.memory_space<vmem>>, %arg13: memref<128x128xbf16, #tpu.memory_space<vmem>>, %arg14: memref<1x128xf32, #tpu.memory_space<vmem>>, %arg15: memref<128x128xbf16, #tpu.memory_space<vmem>>, %arg16: memref<1x128xf32, #tpu.memory_space<vmem>>, %arg17: memref<16x128xf32, #tpu.memory_space<vmem>>, %arg18: memref<16x128xf32, #tpu.memory_space<vmem>>, %arg19: memref<64x128xf32, #tpu.memory_space<vmem>>, %arg20: memref<16x128xf32, #tpu.memory_space<vmem>>) attributes {dimension_semantics = [#tpu.dimension_semantics<arbitrary>], iteration_bounds = array<i64: 4>, scalar_prefetch = 4 : i64, scratch_operands = 3 : i64, tpu.core_type = #tpu.core_type<tc>, window_params = [{pipeline_mode = #tpu.pipeline_mode<synchronous>, transform_indices = @transform_0, window_bounds = array<i64: 128, 128>}, {transform_indices = @transform_1, window_bounds = array<i64: 16, 128>}, {transform_indices = @transform_2, window_bounds = array<i64: 16, 1>}, {pipeline_mode = #tpu.pipeline_mode<synchronous>, transform_indices = @transform_3, window_bounds = array<i64: 16, 1>}, {pipeline_mode = #tpu.pipeline_mode<synchronous>, transform_indices = @transform_4, window_bounds = array<i64: 128, 128>}, {pipeline_mode = #tpu.pipeline_mode<synchronous>, transform_indices = @transform_5, window_bounds = array<i64: 128, 128>}, {pipeline_mode = #tpu.pipeline_mode<synchronous>, transform_indices = @transform_6, window_bounds = array<i64: 1, 128>}, {pipeline_mode = #tpu.pipeline_mode<synchronous>, transform_indices = @transform_7, window_bounds = array<i64: 128, 128>}, {pipeline_mode = #tpu.pipeline_mode<synchronous>, transform_indices = @transform_8, window_bounds = array<i64: 128, 128>}, {pipeline_mode = #tpu.pipeline_mode<synchronous>, transform_indices = @transform_9, window_bounds = array<i64: 1, 128>}, {pipeline_mode = #tpu.pipeline_mode<synchronous>, transform_indices = @transform_10, window_bounds = array<i64: 128, 128>}, {pipeline_mode = #tpu.pipeline_mode<synchronous>, transform_indices = @transform_11, window_bounds = array<i64: 1, 128>}, {pipeline_mode = #tpu.pipeline_mode<synchronous>, transform_indices = @transform_12, window_bounds = array<i64: 16, 128>}]} {
    %c16_i32 = arith.constant 16 : i32
    %0 = arith.muli %arg0, %c16_i32 : i32
    %c0_i32 = arith.constant 0 : i32
    %c16_i32_0 = arith.constant 16 : i32
    %1 = arith.addi %c0_i32, %c16_i32_0 : i32
    %c1_i32 = arith.constant 1 : i32
    scf.for %arg21 = %c0_i32 to %1 step %c1_i32  : i32 {
      %28 = arith.addi %0, %arg21 : i32
      %29 = arith.index_cast %28 : i32 to index
      %30 = memref.load %arg1[%29] : memref<65xi32, #tpu.memory_space<smem>>
      %c1_i32_18 = arith.constant 1 : i32
      %31 = arith.addi %28, %c1_i32_18 : i32
      %32 = arith.index_cast %31 : i32 to index
      %33 = memref.load %arg1[%32] : memref<65xi32, #tpu.memory_space<smem>>
      %cst_19 = arith.constant 0.000000e+00 : f32
      %34 = vector.broadcast %cst_19 : f32 to vector<1x128xf32>
      %35 = arith.subi %33, %30 : i32
      %36 = arith.addi %30, %35 : i32
      %c1_i32_20 = arith.constant 1 : i32
      %37 = scf.for %arg22 = %30 to %36 step %c1_i32_20 iter_args(%arg23 = %34) -> (vector<1x128xf32>)  : i32 {
        %40 = arith.index_cast %arg22 : i32 to index
        %41 = memref.load %arg2[%40] : memref<512xi32, #tpu.memory_space<smem>>
        %42 = arith.index_cast %41 : i32 to index
        %c0_22 = arith.constant 0 : index
        %43 = vector.load %arg5[%42, %c0_22] : memref<128x128xf32, #tpu.memory_space<vmem>>, vector<1x128xf32>
        %44 = arith.addf %arg23, %43 : vector<1x128xf32>
        scf.yield %44 : vector<1x128xf32>
      }
      %38 = arith.index_cast %arg21 : i32 to index
      %c0_21 = arith.constant 0 : index
      %39 = vector.load %arg18[%38, %c0_21] : memref<16x128xf32, #tpu.memory_space<vmem>>, vector<1x128xf32>
      tpu.vector_store %arg18[%38, %c0_21], %37 {strides = array<i32>} : memref<16x128xf32, #tpu.memory_space<vmem>>, vector<1x128xf32>,
    }
    %c16_i32_1 = arith.constant 16 : i32
    %c0 = arith.constant 0 : index
    %c0_2 = arith.constant 0 : index
    %2 = vector.load %arg7[%c0, %c0_2] : memref<16x1xf32, #tpu.memory_space<vmem>>, vector<16x1xf32>
    %cst = arith.constant 1.000000e+00 : f32
    %3 = vector.broadcast %cst : f32 to vector<16x1xf32>
    %4 = arith.maximumf %2, %3 : vector<16x1xf32>
    %5 = tpu.reciprocal %4 {approx = true} : vector<16x1xf32> -> vector<16x1xf32>
    %c0_3 = arith.constant 0 : index
    %c0_4 = arith.constant 0 : index
    %6 = vector.load %arg18[%c0_3, %c0_4] : memref<16x128xf32, #tpu.memory_space<vmem>>, vector<16x128xf32>
    %7 = vector.broadcast %5 : vector<16x1xf32> to vector<16x128xf32>
    %8 = arith.mulf %6, %7 : vector<16x128xf32>
    %9 = arith.truncf %8 : vector<16x128xf32> to vector<16x128xbf16>
    %c0_5 = arith.constant 0 : index
    %c0_6 = arith.constant 0 : index
    %10 = vector.load %arg9[%c0_5, %c0_6] : memref<128x128xbf16, #tpu.memory_space<vmem>>, vector<128x128xbf16>
    %cst_7 = arith.constant dense<0.000000e+00> : vector<16x128xf32>
    %11 = tpu.matmul %9, %10, %cst_7 {dimension_numbers = #tpu.dot_dimension_numbers<[1], [0], [0], [1], [0, 0, 1, 1], [], []>} : vector<16x128xbf16>, vector<128x128xbf16>, vector<16x128xf32> -> vector<16x128xf32>
    %c0_8 = arith.constant 0 : index
    %c0_9 = arith.constant 0 : index
    %12 = vector.load %arg6[%c0_8, %c0_9] : memref<16x128xf32, #tpu.memory_space<vmem>>, vector<16x128xf32>
    %13 = arith.truncf %12 : vector<16x128xf32> to vector<16x128xbf16>
    %c0_10 = arith.constant 0 : index
    %c0_11 = arith.constant 0 : index
    %14 = vector.load %arg10[%c0_10, %c0_11] : memref<128x128xbf16, #tpu.memory_space<vmem>>, vector<128x128xbf16>
    %cst_12 = arith.constant dense<0.000000e+00> : vector<16x128xf32>
    %15 = tpu.matmul %13, %14, %cst_12 {dimension_numbers = #tpu.dot_dimension_numbers<[1], [0], [0], [1], [0, 0, 1, 1], [], []>} : vector<16x128xbf16>, vector<128x128xbf16>, vector<16x128xf32> -> vector<16x128xf32>
    %16 = arith.addf %11, %15 : vector<16x128xf32>
    %c0_13 = arith.constant 0 : index
    %c0_14 = arith.constant 0 : index
    %17 = vector.load %arg11[%c0_13, %c0_14] : memref<1x128xf32, #tpu.memory_space<vmem>>, vector<1x128xf32>
    %18 = vector.broadcast %17 : vector<1x128xf32> to vector<16x128xf32>
    %19 = arith.addf %16, %18 : vector<16x128xf32>
    %cst_15 = arith.constant 0.000000e+00 : f32
    %20 = vector.broadcast %cst_15 : f32 to vector<16x128xf32>
    %21 = arith.maximumf %19, %20 : vector<16x128xf32>
    %22 = tpu.assume_multiple %0, 16 : i32
    %23 = arith.index_cast %22 : i32 to index
    %c0_16 = arith.constant 0 : index
    %24 = vector.load %arg19[%23, %c0_16] : memref<64x128xf32, #tpu.memory_space<vmem>>, vector<16x128xf32>
    tpu.vector_store %arg19[%23, %c0_16], %21 {strides = array<i32>} : memref<64x128xf32, #tpu.memory_space<vmem>>, vector<16x128xf32>,
    %c3_i32 = arith.constant 3 : i32
    %25 = arith.cmpi eq, %arg0, %c3_i32 : i32
    %26 = arith.extui %25 : i1 to i32
    %c0_i32_17 = arith.constant 0 : i32
    %27 = arith.cmpi ne, %26, %c0_i32_17 : i32
    scf.if %27 {
      %c0_i32_18 = arith.constant 0 : i32
      %c16_i32_19 = arith.constant 16 : i32
      %28 = arith.addi %c0_i32_18, %c16_i32_19 : i32
      %c1_i32_20 = arith.constant 1 : i32
      scf.for %arg21 = %c0_i32_18 to %28 step %c1_i32_20  : i32 {
        %74 = arith.index_cast %arg21 : i32 to index
        %75 = memref.load %arg3[%74] : memref<17xi32, #tpu.memory_space<smem>>
        %c1_i32_49 = arith.constant 1 : i32
        %76 = arith.addi %arg21, %c1_i32_49 : i32
        %77 = arith.index_cast %76 : i32 to index
        %78 = memref.load %arg3[%77] : memref<17xi32, #tpu.memory_space<smem>>
        %cst_50 = arith.constant 0.000000e+00 : f32
        %79 = vector.broadcast %cst_50 : f32 to vector<1x128xf32>
        %80 = arith.subi %78, %75 : i32
        %81 = arith.addi %75, %80 : i32
        %c1_i32_51 = arith.constant 1 : i32
        %82 = scf.for %arg22 = %75 to %81 step %c1_i32_51 iter_args(%arg23 = %79) -> (vector<1x128xf32>)  : i32 {
          %85 = arith.index_cast %arg22 : i32 to index
          %86 = memref.load %arg4[%85] : memref<128xi32, #tpu.memory_space<smem>>
          %87 = arith.index_cast %86 : i32 to index
          %c0_53 = arith.constant 0 : index
          %88 = vector.load %arg19[%87, %c0_53] : memref<64x128xf32, #tpu.memory_space<vmem>>, vector<1x128xf32>
          %89 = arith.addf %arg23, %88 : vector<1x128xf32>
          scf.yield %89 : vector<1x128xf32>
        }
        %83 = arith.index_cast %arg21 : i32 to index
        %c0_52 = arith.constant 0 : index
        %84 = vector.load %arg20[%83, %c0_52] : memref<16x128xf32, #tpu.memory_space<vmem>>, vector<1x128xf32>
        tpu.vector_store %arg20[%83, %c0_52], %82 {strides = array<i32>} : memref<16x128xf32, #tpu.memory_space<vmem>>, vector<1x128xf32>,
      }
      %c16_i32_21 = arith.constant 16 : i32
      %c0_22 = arith.constant 0 : index
      %c0_23 = arith.constant 0 : index
      %29 = vector.load %arg8[%c0_22, %c0_23] : memref<16x1xf32, #tpu.memory_space<vmem>>, vector<16x1xf32>
      %cst_24 = arith.constant 1.000000e+00 : f32
      %30 = vector.broadcast %cst_24 : f32 to vector<16x1xf32>
      %31 = arith.maximumf %29, %30 : vector<16x1xf32>
      %32 = tpu.reciprocal %31 {approx = true} : vector<16x1xf32> -> vector<16x1xf32>
      %c0_25 = arith.constant 0 : index
      %c0_26 = arith.constant 0 : index
      %33 = vector.load %arg20[%c0_25, %c0_26] : memref<16x128xf32, #tpu.memory_space<vmem>>, vector<16x128xf32>
      %34 = vector.broadcast %32 : vector<16x1xf32> to vector<16x128xf32>
      %35 = arith.mulf %33, %34 : vector<16x128xf32>
      %c0_27 = arith.constant 0 : index
      %c0_28 = arith.constant 0 : index
      %36 = vector.load %arg19[%c0_27, %c0_28] : memref<64x128xf32, #tpu.memory_space<vmem>>, vector<16x128xf32>
      %37 = arith.truncf %35 : vector<16x128xf32> to vector<16x128xbf16>
      %c0_29 = arith.constant 0 : index
      %c0_30 = arith.constant 0 : index
      %38 = vector.load %arg12[%c0_29, %c0_30] : memref<128x128xbf16, #tpu.memory_space<vmem>>, vector<128x128xbf16>
      %cst_31 = arith.constant dense<0.000000e+00> : vector<16x128xf32>
      %39 = tpu.matmul %37, %38, %cst_31 {dimension_numbers = #tpu.dot_dimension_numbers<[1], [0], [0], [1], [0, 0, 1, 1], [], []>} : vector<16x128xbf16>, vector<128x128xbf16>, vector<16x128xf32> -> vector<16x128xf32>
      %40 = arith.truncf %36 : vector<16x128xf32> to vector<16x128xbf16>
      %c0_32 = arith.constant 0 : index
      %c0_33 = arith.constant 0 : index
      %41 = vector.load %arg13[%c0_32, %c0_33] : memref<128x128xbf16, #tpu.memory_space<vmem>>, vector<128x128xbf16>
      %cst_34 = arith.constant dense<0.000000e+00> : vector<16x128xf32>
      %42 = tpu.matmul %40, %41, %cst_34 {dimension_numbers = #tpu.dot_dimension_numbers<[1], [0], [0], [1], [0, 0, 1, 1], [], []>} : vector<16x128xbf16>, vector<128x128xbf16>, vector<16x128xf32> -> vector<16x128xf32>
      %43 = arith.addf %39, %42 : vector<16x128xf32>
      %c0_35 = arith.constant 0 : index
      %c0_36 = arith.constant 0 : index
      %44 = vector.load %arg14[%c0_35, %c0_36] : memref<1x128xf32, #tpu.memory_space<vmem>>, vector<1x128xf32>
      %45 = vector.broadcast %44 : vector<1x128xf32> to vector<16x128xf32>
      %46 = arith.addf %43, %45 : vector<16x128xf32>
      %cst_37 = arith.constant 0.000000e+00 : f32
      %47 = vector.broadcast %cst_37 : f32 to vector<16x128xf32>
      %48 = arith.maximumf %46, %47 : vector<16x128xf32>
      %49 = arith.truncf %48 : vector<16x128xf32> to vector<16x128xbf16>
      %c0_38 = arith.constant 0 : index
      %c0_39 = arith.constant 0 : index
      %50 = vector.load %arg15[%c0_38, %c0_39] : memref<128x128xbf16, #tpu.memory_space<vmem>>, vector<128x128xbf16>
      %cst_40 = arith.constant dense<0.000000e+00> : vector<16x128xf32>
      %51 = tpu.matmul %49, %50, %cst_40 {dimension_numbers = #tpu.dot_dimension_numbers<[1], [0], [0], [1], [0, 0, 1, 1], [], []>} : vector<16x128xbf16>, vector<128x128xbf16>, vector<16x128xf32> -> vector<16x128xf32>
      %c0_41 = arith.constant 0 : index
      %c0_42 = arith.constant 0 : index
      %52 = vector.load %arg16[%c0_41, %c0_42] : memref<1x128xf32, #tpu.memory_space<vmem>>, vector<1x128xf32>
      %53 = vector.broadcast %52 : vector<1x128xf32> to vector<16x128xf32>
      %54 = arith.addf %51, %53 : vector<16x128xf32>
      %cst_43 = arith.constant 0.000000e+00 : f32
      %55 = vector.broadcast %cst_43 : f32 to vector<16x128xf32>
      %56 = arith.maximumf %54, %55 : vector<16x128xf32>
      %57 = tpu.iota {dimensions = array<i32: 1>} : vector<16x128xi32>
      %c8_i32 = arith.constant 8 : i32
      %58 = vector.broadcast %c8_i32 : i32 to vector<16x128xi32>
      %59 = arith.cmpi slt, %57, %58 : vector<16x128xi32>
      %cst_44 = arith.constant -1.000000e+30 : f32
      %60 = vector.broadcast %cst_44 : f32 to vector<16x128xf32>
      %61 = arith.select %59, %56, %60 : vector<16x128xi1>, vector<16x128xf32>
      %cst_45 = arith.constant dense<0xFF800000> : vector<16xf32>
      %62 = vector.multi_reduction <maximumf>, %61, %cst_45 [1] : vector<16x128xf32> to vector<16xf32>
      %63 = vector.shape_cast %62 : vector<16xf32> to vector<16x1xf32>
      %64 = vector.broadcast %63 : vector<16x1xf32> to vector<16x128xf32>
      %65 = arith.subf %61, %64 : vector<16x128xf32>
      %66 = math.exp %65 : vector<16x128xf32>
      %cst_46 = arith.constant dense<0.000000e+00> : vector<16xf32>
      %67 = vector.multi_reduction <add>, %66, %cst_46 [1] : vector<16x128xf32> to vector<16xf32>
      %68 = vector.shape_cast %67 : vector<16xf32> to vector<16x1xf32>
      %69 = math.log %68 : vector<16x1xf32>
      %70 = arith.addf %69, %63 : vector<16x1xf32>
      %71 = vector.broadcast %70 : vector<16x1xf32> to vector<16x128xf32>
      %72 = arith.subf %56, %71 : vector<16x128xf32>
      %c0_47 = arith.constant 0 : index
      %c0_48 = arith.constant 0 : index
      %73 = vector.load %arg17[%c0_47, %c0_48] : memref<16x128xf32, #tpu.memory_space<vmem>>, vector<16x128xf32>
      tpu.vector_store %arg17[%c0_47, %c0_48], %72 {strides = array<i32>} : memref<16x128xf32, #tpu.memory_space<vmem>>, vector<16x128xf32>,
    } else {
    }
    return
  }
  func.func @transform_0(%arg0: i32, %arg1: memref<65xi32, #tpu.memory_space<smem>>, %arg2: memref<512xi32, #tpu.memory_space<smem>>, %arg3: memref<17xi32, #tpu.memory_space<smem>>, %arg4: memref<128xi32, #tpu.memory_space<smem>>) -> (i32, i32) {
    %c0_i32 = arith.constant 0 : i32
    %c0_i32_0 = arith.constant 0 : i32
    %c0_i32_1 = arith.constant 0 : i32
    return %c0_i32, %c0_i32_0 : i32, i32
  }
  func.func @transform_1(%arg0: i32, %arg1: memref<65xi32, #tpu.memory_space<smem>>, %arg2: memref<512xi32, #tpu.memory_space<smem>>, %arg3: memref<17xi32, #tpu.memory_space<smem>>, %arg4: memref<128xi32, #tpu.memory_space<smem>>) -> (i32, i32) {
    %c0_i32 = arith.constant 0 : i32
    %c0_i32_0 = arith.constant 0 : i32
    return %arg0, %c0_i32 : i32, i32
  }
  func.func @transform_2(%arg0: i32, %arg1: memref<65xi32, #tpu.memory_space<smem>>, %arg2: memref<512xi32, #tpu.memory_space<smem>>, %arg3: memref<17xi32, #tpu.memory_space<smem>>, %arg4: memref<128xi32, #tpu.memory_space<smem>>) -> (i32, i32) {
    %c0_i32 = arith.constant 0 : i32
    %c0_i32_0 = arith.constant 0 : i32
    return %arg0, %c0_i32 : i32, i32
  }
  func.func @transform_3(%arg0: i32, %arg1: memref<65xi32, #tpu.memory_space<smem>>, %arg2: memref<512xi32, #tpu.memory_space<smem>>, %arg3: memref<17xi32, #tpu.memory_space<smem>>, %arg4: memref<128xi32, #tpu.memory_space<smem>>) -> (i32, i32) {
    %c0_i32 = arith.constant 0 : i32
    %c0_i32_0 = arith.constant 0 : i32
    %c0_i32_1 = arith.constant 0 : i32
    return %c0_i32, %c0_i32_0 : i32, i32
  }
  func.func @transform_4(%arg0: i32, %arg1: memref<65xi32, #tpu.memory_space<smem>>, %arg2: memref<512xi32, #tpu.memory_space<smem>>, %arg3: memref<17xi32, #tpu.memory_space<smem>>, %arg4: memref<128xi32, #tpu.memory_space<smem>>) -> (i32, i32) {
    %c0_i32 = arith.constant 0 : i32
    %c0_i32_0 = arith.constant 0 : i32
    %c0_i32_1 = arith.constant 0 : i32
    return %c0_i32, %c0_i32_0 : i32, i32
  }
  func.func @transform_5(%arg0: i32, %arg1: memref<65xi32, #tpu.memory_space<smem>>, %arg2: memref<512xi32, #tpu.memory_space<smem>>, %arg3: memref<17xi32, #tpu.memory_space<smem>>, %arg4: memref<128xi32, #tpu.memory_space<smem>>) -> (i32, i32) {
    %c0_i32 = arith.constant 0 : i32
    %c0_i32_0 = arith.constant 0 : i32
    %c0_i32_1 = arith.constant 0 : i32
    return %c0_i32, %c0_i32_0 : i32, i32
  }
  func.func @transform_6(%arg0: i32, %arg1: memref<65xi32, #tpu.memory_space<smem>>, %arg2: memref<512xi32, #tpu.memory_space<smem>>, %arg3: memref<17xi32, #tpu.memory_space<smem>>, %arg4: memref<128xi32, #tpu.memory_space<smem>>) -> (i32, i32) {
    %c0_i32 = arith.constant 0 : i32
    %c0_i32_0 = arith.constant 0 : i32
    %c0_i32_1 = arith.constant 0 : i32
    return %c0_i32, %c0_i32_0 : i32, i32
  }
  func.func @transform_7(%arg0: i32, %arg1: memref<65xi32, #tpu.memory_space<smem>>, %arg2: memref<512xi32, #tpu.memory_space<smem>>, %arg3: memref<17xi32, #tpu.memory_space<smem>>, %arg4: memref<128xi32, #tpu.memory_space<smem>>) -> (i32, i32) {
    %c0_i32 = arith.constant 0 : i32
    %c0_i32_0 = arith.constant 0 : i32
    %c0_i32_1 = arith.constant 0 : i32
    return %c0_i32, %c0_i32_0 : i32, i32
  }
  func.func @transform_8(%arg0: i32, %arg1: memref<65xi32, #tpu.memory_space<smem>>, %arg2: memref<512xi32, #tpu.memory_space<smem>>, %arg3: memref<17xi32, #tpu.memory_space<smem>>, %arg4: memref<128xi32, #tpu.memory_space<smem>>) -> (i32, i32) {
    %c0_i32 = arith.constant 0 : i32
    %c0_i32_0 = arith.constant 0 : i32
    %c0_i32_1 = arith.constant 0 : i32
    return %c0_i32, %c0_i32_0 : i32, i32
  }
  func.func @transform_9(%arg0: i32, %arg1: memref<65xi32, #tpu.memory_space<smem>>, %arg2: memref<512xi32, #tpu.memory_space<smem>>, %arg3: memref<17xi32, #tpu.memory_space<smem>>, %arg4: memref<128xi32, #tpu.memory_space<smem>>) -> (i32, i32) {
    %c0_i32 = arith.constant 0 : i32
    %c0_i32_0 = arith.constant 0 : i32
    %c0_i32_1 = arith.constant 0 : i32
    return %c0_i32, %c0_i32_0 : i32, i32
  }
  func.func @transform_10(%arg0: i32, %arg1: memref<65xi32, #tpu.memory_space<smem>>, %arg2: memref<512xi32, #tpu.memory_space<smem>>, %arg3: memref<17xi32, #tpu.memory_space<smem>>, %arg4: memref<128xi32, #tpu.memory_space<smem>>) -> (i32, i32) {
    %c0_i32 = arith.constant 0 : i32
    %c0_i32_0 = arith.constant 0 : i32
    %c0_i32_1 = arith.constant 0 : i32
    return %c0_i32, %c0_i32_0 : i32, i32
  }
  func.func @transform_11(%arg0: i32, %arg1: memref<65xi32, #tpu.memory_space<smem>>, %arg2: memref<512xi32, #tpu.memory_space<smem>>, %arg3: memref<17xi32, #tpu.memory_space<smem>>, %arg4: memref<128xi32, #tpu.memory_space<smem>>) -> (i32, i32) {
    %c0_i32 = arith.constant 0 : i32
    %c0_i32_0 = arith.constant 0 : i32
    %c0_i32_1 = arith.constant 0 : i32
    return %c0_i32, %c0_i32_0 : i32, i32
  }
  func.func @transform_12(%arg0: i32, %arg1: memref<65xi32, #tpu.memory_space<smem>>, %arg2: memref<512xi32, #tpu.memory_space<smem>>, %arg3: memref<17xi32, #tpu.memory_space<smem>>, %arg4: memref<128xi32, #tpu.memory_space<smem>>) -> (i32, i32) {
    %c0_i32 = arith.constant 0 : i32
    %c0_i32_0 = arith.constant 0 : i32
    %c0_i32_1 = arith.constant 0 : i32
    return %c0_i32, %c0_i32_0 : i32, i32
  }
}

</mosaic_0001>

<llo_original>
// kernel: tpu_custom_call.1
$region0: #{tpu_custom_call.1}
  #allocation0 [shape = 'u32[]', space=smem, size = 0x4, offset = 0x4, fixed_abs, tag = 'smem constant byte address 0x4 - core index']
  #allocation1 [shape = 'u32[144,128]{1,0:T(1,128)}', space=vmem, size = 0x12000, scoped, tag = 'internal scratch']
  #allocation2 [shape = 'f32[16,128]{1,0:T(8,128)}', space=vmem, size = 0x2000, scoped, tag = 'scratch operand']
  #allocation3 [shape = 'f32[64,128]{1,0:T(8,128)}', space=vmem, size = 0x8000, scoped, tag = 'scratch operand']
  #allocation4 [shape = 'f32[16,128]{1,0:T(8,128)}', space=vmem, size = 0x2000, scoped, tag = 'scratch operand']
  #allocation5 [shape = 's32[1]{0}', space=sflag, size = 0x4, scoped, tag = 'scoped memory for tpu_custom_call.1']
  #allocation6 [shape = 'u8[512]{0}', space=smem, size = 0x200, scoped, tag = 'prefetched SMEM operand 0']
  #allocation7 [shape = 'u8[2048]{0}', space=smem, size = 0x800, scoped, tag = 'prefetched SMEM operand 1']
  #allocation8 [shape = 'u8[512]{0}', space=smem, size = 0x200, scoped, tag = 'prefetched SMEM operand 2']
  #allocation9 [shape = 'u8[512]{0}', space=smem, size = 0x200, scoped, tag = 'prefetched SMEM operand 3']
  %s0 = inlined_call_operand.vmem [shape: s32[65], index: 0, kind: input, shape index: {}]
  %s1 = inlined_call_operand.hbm [shape: s32[512], index: 1, kind: input, shape index: {}]
  %s2 = inlined_call_operand.vmem [shape: s32[17], index: 2, kind: input, shape index: {}]
  %s3 = inlined_call_operand.hbm [shape: s32[128], index: 3, kind: input, shape index: {}]
  %s4 = inlined_call_operand.hbm [shape: f32[128,128], index: 4, kind: input, shape index: {}]
  %s5 = inlined_call_operand.vmem [shape: f32[64,128], index: 5, kind: input, shape index: {}]
  %s6 = inlined_call_operand.vmem [shape: f32[64,1], index: 6, kind: input, shape index: {}]
  %s7 = inlined_call_operand.vmem [shape: f32[16,1], index: 7, kind: input, shape index: {}]
  %s8 = inlined_call_operand.hbm [shape: bf16[128,128], index: 8, kind: input, shape index: {}]
  %s9 = inlined_call_operand.hbm [shape: bf16[128,128], index: 9, kind: input, shape index: {}]
  %s10 = inlined_call_operand.hbm [shape: f32[1,128], index: 10, kind: input, shape index: {}]
  %s11 = inlined_call_operand.hbm [shape: bf16[128,128], index: 11, kind: input, shape index: {}]
  %s12 = inlined_call_operand.hbm [shape: bf16[128,128], index: 12, kind: input, shape index: {}]
  %s13 = inlined_call_operand.hbm [shape: f32[1,128], index: 13, kind: input, shape index: {}]
  %s14 = inlined_call_operand.vmem [shape: bf16[128,128], index: 14, kind: input, shape index: {}]
  %s15 = inlined_call_operand.vmem [shape: f32[1,128], index: 15, kind: input, shape index: {}]
  %s16 = inlined_call_operand.hbm [shape: f32[16,128], index: 16, kind: output, shape index: {}]
  %s17 = sld [smem:[#allocation0]]
  $region141: #{tpu_custom_call.1} parent=0
    _
  %s19 = ssub.s32 1, %s17
  %s20 = scalar_select 0, %s19, %s17
  %s21 = sshll.u32 %s0, 4
  %s22 = int_to_ptr.vmem [resolvable:$true] %s21
  %24 = dma.vmem_to_smem %s22, 16, [#allocation6], [#allocation5]
  %26 = dma.hbm_to_smem %s1, 64, [#allocation7], [#allocation5]
  %s27 = sshll.u32 %s2, 4
  %s28 = int_to_ptr.vmem [resolvable:$true] %s27
  %30 = dma.vmem_to_smem %s28, 16, [#allocation8], [#allocation5]
  %32 = dma.hbm_to_smem %s3, 16, [#allocation9], [#allocation5]
  %33 = dma.done [#allocation5], 112
  %34 = sfence
  $region1: #{tpu_custom_call.1} parent=0
    #allocation10 [shape = 'u8[65536]{0}', space=vmem, size = 0x10000, scoped, tag = 'input window, operand 4, single buffered']
    #allocation11 [shape = 's32[2]{0}', space=sflag, size = 0x8, scoped, tag = 'scoped memory for tpu_custom_call.1']
    #allocation12 [shape = 's32[2]{0}', space=sflag, size = 0x8, scoped, tag = 'scoped memory for tpu_custom_call.1']
    #allocation13 [shape = 'u8[32768]{0}', space=vmem, size = 0x8000, scoped, tag = 'input window, operand 8, single buffered']
    #allocation14 [shape = 's32[1]{0}', space=sflag, size = 0x4, scoped, tag = 'scoped memory for tpu_custom_call.1']
    #allocation15 [shape = 'u8[32768]{0}', space=vmem, size = 0x8000, scoped, tag = 'input window, operand 9, single buffered']
    #allocation16 [shape = 'u8[512]{0}', space=vmem, size = 0x400, scoped, tag = 'input window, operand 10, single buffered']
    #allocation17 [shape = 's32[1]{0}', space=sflag, size = 0x4, scoped, tag = 'scoped memory for tpu_custom_call.1']
    #allocation18 [shape = 'u8[32768]{0}', space=vmem, size = 0x8000, scoped, tag = 'input window, operand 11, single buffered']
    #allocation19 [shape = 'u8[32768]{0}', space=vmem, size = 0x8000, scoped, tag = 'input window, operand 12, single buffered']
    #allocation20 [shape = 's32[1]{0}', space=sflag, size = 0x4, scoped, tag = 'scoped memory for tpu_custom_call.1']
    #allocation21 [shape = 'u8[512]{0}', space=vmem, size = 0x400, scoped, tag = 'input window, operand 13, single buffered']
    #allocation22 [shape = 'u8[8192]{0}', space=vmem, size = 0x2000, scoped, tag = 'output window, operand 0, single buffered']
    %35 = vsyncpa [#allocation11], 0
    %36 = vsyncpa [#allocation14], 0
    %37 = vsyncpa [#allocation17], 0
    %38 = vsyncpa [#allocation20], 0
    %39 = vsyncpa [#allocation12], 0
    loop: start=0, step=1, limit=6
    $region2: #{tpu_custom_call.1} parent=1 // loop_pre_header
      _
    $region3: #{tpu_custom_call.1} parent=1 // loop_header
      %s41 = sphi 0, %s45
      %p42 = scmp.ge.s32.totalorder %s41, 6
      %s49 = sphi 0, %s49
      %s51 = sphi 0, %s49
      %s52 = sphi 0, %s51
      %s66 = sphi 0, %s52
      %s72 = sphi 0, %s74
      %s75 = sphi 0, %s72
      %s76 = sphi 0, %s75
      %s92 = sphi 0, %s76
      %s98 = sphi 0, %s100
      %s101 = sphi 0, %s98
      %s102 = sphi 0, %s101
      %s118 = sphi 0, %s102
      %s122 = sphi 0, %s122
      %s124 = sphi 0, %s122
      %s125 = sphi 0, %s124
      %s139 = sphi 0, %s125
      %s143 = sphi 0, %s143
      %s145 = sphi 0, %s143
      %s146 = sphi 0, %s145
      %s160 = sphi 0, %s146
      %s164 = sphi 0, %s164
      %s166 = sphi 0, %s164
      %s167 = sphi 0, %s166
      %s181 = sphi 0, %s167
      %s185 = sphi 0, %s185
      %s187 = sphi 0, %s185
      %s188 = sphi 0, %s187
      %s202 = sphi 0, %s188
      %s206 = sphi 0, %s206
      %s208 = sphi 0, %s206
      %s209 = sphi 0, %s208
      %s223 = sphi 0, %s209
      %s227 = sphi 0, %s227
      %s229 = sphi 0, %s227
      %s230 = sphi 0, %s229
      %s244 = sphi 0, %s230
      %s248 = sphi 0, %s248
      %s250 = sphi 0, %s248
      %s251 = sphi 0, %s250
      %s265 = sphi 0, %s251
      %s269 = sphi 0, %s269
      %s271 = sphi 0, %s269
      %s272 = sphi 0, %s271
      %s286 = sphi 0, %s272
      %s290 = sphi 0, %s290
      %s292 = sphi 0, %s290
      %s293 = sphi 0, %s292
      %s307 = sphi 0, %s293
      %s311 = sphi 0, %s311
      %s313 = sphi 0, %s311
      %s314 = sphi 0, %s313
      %s328 = sphi 0, %s314
    $region4: #{tpu_custom_call.1} parent=1 // loop_header_branch
      %44 = sbr.rel (%p42) target = $region8
    $region5: #{tpu_custom_call.1} parent=1 // loop_body
      %s46 = ssub.s32 %s41, 1
      %s47 = ssub.s32 %s41, 2
      %s48 = sadd.s32 %s41, 1
      %s50 = sadd.s32 %s49, 1
      %p53 = scmp.eq.s32.totalorder %s41, 3
      %p54 = scmp.ne.s32.totalorder %s49, %s51
      %p55 = scmp.eq.s32.totalorder %s41, 0
      %p56 = por %p54, %p55
      %p57 = scmp.ne.s32.totalorder %s49, %s51
      %p58 = scmp.eq.s32.totalorder %s46, 3
      %p59 = por %p57, %p58
      %p60 = scmp.ne.s32.totalorder %s51, %s52
      %p61 = scmp.eq.s32.totalorder %s46, 0
      %p62 = por %p60, %p61
      %p63 = scmp.ne.s32.totalorder %s51, %s52
      %p64 = scmp.eq.s32.totalorder %s47, 3
      %p65 = por %p63, %p64
      %p67 = scmp.ne.s32.totalorder %s52, %s66
      %p68 = scmp.eq.s32.totalorder %s47, 0
      %p69 = por %p67, %p68
      %s70 = ssub.s32 %s41, %s48
      %p71 = scmp.eq.s32.totalorder %s70, 0
      %s73 = sadd.s32 %s72, 1
      %s74 = scalar_select %p71, %s72, %s73
      %p77 = pneg %p71
      %p78 = scmp.eq.s32.totalorder %s41, 3
      %p79 = por %p77, %p78
      %p80 = scmp.ne.s32.totalorder %s72, %s75
      %p81 = scmp.eq.s32.totalorder %s41, 0
      %p82 = por %p80, %p81
      %p83 = scmp.ne.s32.totalorder %s72, %s75
      %p84 = scmp.eq.s32.totalorder %s46, 3
      %p85 = por %p83, %p84
      %p86 = scmp.ne.s32.totalorder %s75, %s76
      %p87 = scmp.eq.s32.totalorder %s46, 0
      %p88 = por %p86, %p87
      %p89 = scmp.ne.s32.totalorder %s75, %s76
      %p90 = scmp.eq.s32.totalorder %s47, 3
      %p91 = por %p89, %p90
      %p93 = scmp.ne.s32.totalorder %s76, %s92
      %p94 = scmp.eq.s32.totalorder %s47, 0
      %p95 = por %p93, %p94
      %s96 = ssub.s32 %s41, %s48
      %p97 = scmp.eq.s32.totalorder %s96, 0
      %s99 = sadd.s32 %s98, 1
      %s100 = scalar_select %p97, %s98, %s99
      %p103 = pneg %p97
      %p104 = scmp.eq.s32.totalorder %s41, 3
      %p105 = por %p103, %p104
      %p106 = scmp.ne.s32.totalorder %s98, %s101
      %p107 = scmp.eq.s32.totalorder %s41, 0
      %p108 = por %p106, %p107
      %p109 = scmp.ne.s32.totalorder %s98, %s101
      %p110 = scmp.eq.s32.totalorder %s46, 3
      %p111 = por %p109, %p110
      %p112 = scmp.ne.s32.totalorder %s101, %s102
      %p113 = scmp.eq.s32.totalorder %s46, 0
      %p114 = por %p112, %p113
      %p115 = scmp.ne.s32.totalorder %s101, %s102
      %p116 = scmp.eq.s32.totalorder %s47, 3
      %p117 = por %p115, %p116
      %p119 = scmp.ne.s32.totalorder %s102, %s118
      %p120 = scmp.eq.s32.totalorder %s47, 0
      %p121 = por %p119, %p120
      %s123 = sadd.s32 %s122, 1
      %p126 = scmp.eq.s32.totalorder %s41, 3
      %p127 = scmp.ne.s32.totalorder %s122, %s124
      %p128 = scmp.eq.s32.totalorder %s41, 0
      %p129 = por %p127, %p128
      %p130 = scmp.ne.s32.totalorder %s122, %s124
      %p131 = scmp.eq.s32.totalorder %s46, 3
      %p132 = por %p130, %p131
      %p133 = scmp.ne.s32.totalorder %s124, %s125
      %p134 = scmp.eq.s32.totalorder %s46, 0
      %p135 = por %p133, %p134
      %p136 = scmp.ne.s32.totalorder %s124, %s125
      %p137 = scmp.eq.s32.totalorder %s47, 3
      %p138 = por %p136, %p137
      %p140 = scmp.ne.s32.totalorder %s125, %s139
      %p141 = scmp.eq.s32.totalorder %s47, 0
      %p142 = por %p140, %p141
      %s144 = sadd.s32 %s143, 1
      %p147 = scmp.eq.s32.totalorder %s41, 3
      %p148 = scmp.ne.s32.totalorder %s143, %s145
      %p149 = scmp.eq.s32.totalorder %s41, 0
      %p150 = por %p148, %p149
      %p151 = scmp.ne.s32.totalorder %s143, %s145
      %p152 = scmp.eq.s32.totalorder %s46, 3
      %p153 = por %p151, %p152
      %p154 = scmp.ne.s32.totalorder %s145, %s146
      %p155 = scmp.eq.s32.totalorder %s46, 0
      %p156 = por %p154, %p155
      %p157 = scmp.ne.s32.totalorder %s145, %s146
      %p158 = scmp.eq.s32.totalorder %s47, 3
      %p159 = por %p157, %p158
      %p161 = scmp.ne.s32.totalorder %s146, %s160
      %p162 = scmp.eq.s32.totalorder %s47, 0
      %p163 = por %p161, %p162
      %s165 = sadd.s32 %s164, 1
      %p168 = scmp.eq.s32.totalorder %s41, 3
      %p169 = scmp.ne.s32.totalorder %s164, %s166
      %p170 = scmp.eq.s32.totalorder %s41, 0
      %p171 = por %p169, %p170
      %p172 = scmp.ne.s32.totalorder %s164, %s166
      %p173 = scmp.eq.s32.totalorder %s46, 3
      %p174 = por %p172, %p173
      %p175 = scmp.ne.s32.totalorder %s166, %s167
      %p176 = scmp.eq.s32.totalorder %s46, 0
      %p177 = por %p175, %p176
      %p178 = scmp.ne.s32.totalorder %s166, %s167
      %p179 = scmp.eq.s32.totalorder %s47, 3
      %p180 = por %p178, %p179
      %p182 = scmp.ne.s32.totalorder %s167, %s181
      %p183 = scmp.eq.s32.totalorder %s47, 0
      %p184 = por %p182, %p183
      %s186 = sadd.s32 %s185, 1
      %p189 = scmp.eq.s32.totalorder %s41, 3
      %p190 = scmp.ne.s32.totalorder %s185, %s187
      %p191 = scmp.eq.s32.totalorder %s41, 0
      %p192 = por %p190, %p191
      %p193 = scmp.ne.s32.totalorder %s185, %s187
      %p194 = scmp.eq.s32.totalorder %s46, 3
      %p195 = por %p193, %p194
      %p196 = scmp.ne.s32.totalorder %s187, %s188
      %p197 = scmp.eq.s32.totalorder %s46, 0
      %p198 = por %p196, %p197
      %p199 = scmp.ne.s32.totalorder %s187, %s188
      %p200 = scmp.eq.s32.totalorder %s47, 3
      %p201 = por %p199, %p200
      %p203 = scmp.ne.s32.totalorder %s188, %s202
      %p204 = scmp.eq.s32.totalorder %s47, 0
      %p205 = por %p203, %p204
      %s207 = sadd.s32 %s206, 1
      %p210 = scmp.eq.s32.totalorder %s41, 3
      %p211 = scmp.ne.s32.totalorder %s206, %s208
      %p212 = scmp.eq.s32.totalorder %s41, 0
      %p213 = por %p211, %p212
      %p214 = scmp.ne.s32.totalorder %s206, %s208
      %p215 = scmp.eq.s32.totalorder %s46, 3
      %p216 = por %p214, %p215
      %p217 = scmp.ne.s32.totalorder %s208, %s209
      %p218 = scmp.eq.s32.totalorder %s46, 0
      %p219 = por %p217, %p218
      %p220 = scmp.ne.s32.totalorder %s208, %s209
      %p221 = scmp.eq.s32.totalorder %s47, 3
      %p222 = por %p220, %p221
      %p224 = scmp.ne.s32.totalorder %s209, %s223
      %p225 = scmp.eq.s32.totalorder %s47, 0
      %p226 = por %p224, %p225
      %s228 = sadd.s32 %s227, 1
      %p231 = scmp.eq.s32.totalorder %s41, 3
      %p232 = scmp.ne.s32.totalorder %s227, %s229
      %p233 = scmp.eq.s32.totalorder %s41, 0
      %p234 = por %p232, %p233
      %p235 = scmp.ne.s32.totalorder %s227, %s229
      %p236 = scmp.eq.s32.totalorder %s46, 3
      %p237 = por %p235, %p236
      %p238 = scmp.ne.s32.totalorder %s229, %s230
      %p239 = scmp.eq.s32.totalorder %s46, 0
      %p240 = por %p238, %p239
      %p241 = scmp.ne.s32.totalorder %s229, %s230
      %p242 = scmp.eq.s32.totalorder %s47, 3
      %p243 = por %p241, %p242
      %p245 = scmp.ne.s32.totalorder %s230, %s244
      %p246 = scmp.eq.s32.totalorder %s47, 0
      %p247 = por %p245, %p246
      %s249 = sadd.s32 %s248, 1
      %p252 = scmp.eq.s32.totalorder %s41, 3
      %p253 = scmp.ne.s32.totalorder %s248, %s250
      %p254 = scmp.eq.s32.totalorder %s41, 0
      %p255 = por %p253, %p254
      %p256 = scmp.ne.s32.totalorder %s248, %s250
      %p257 = scmp.eq.s32.totalorder %s46, 3
      %p258 = por %p256, %p257
      %p259 = scmp.ne.s32.totalorder %s250, %s251
      %p260 = scmp.eq.s32.totalorder %s46, 0
      %p261 = por %p259, %p260
      %p262 = scmp.ne.s32.totalorder %s250, %s251
      %p263 = scmp.eq.s32.totalorder %s47, 3
      %p264 = por %p262, %p263
      %p266 = scmp.ne.s32.totalorder %s251, %s265
      %p267 = scmp.eq.s32.totalorder %s47, 0
      %p268 = por %p266, %p267
      %s270 = sadd.s32 %s269, 1
      %p273 = scmp.eq.s32.totalorder %s41, 3
      %p274 = scmp.ne.s32.totalorder %s269, %s271
      %p275 = scmp.eq.s32.totalorder %s41, 0
      %p276 = por %p274, %p275
      %p277 = scmp.ne.s32.totalorder %s269, %s271
      %p278 = scmp.eq.s32.totalorder %s46, 3
      %p279 = por %p277, %p278
      %p280 = scmp.ne.s32.totalorder %s271, %s272
      %p281 = scmp.eq.s32.totalorder %s46, 0
      %p282 = por %p280, %p281
      %p283 = scmp.ne.s32.totalorder %s271, %s272
      %p284 = scmp.eq.s32.totalorder %s47, 3
      %p285 = por %p283, %p284
      %p287 = scmp.ne.s32.totalorder %s272, %s286
      %p288 = scmp.eq.s32.totalorder %s47, 0
      %p289 = por %p287, %p288
      %s291 = sadd.s32 %s290, 1
      %p294 = scmp.eq.s32.totalorder %s41, 3
      %p295 = scmp.ne.s32.totalorder %s290, %s292
      %p296 = scmp.eq.s32.totalorder %s41, 0
      %p297 = por %p295, %p296
      %p298 = scmp.ne.s32.totalorder %s290, %s292
      %p299 = scmp.eq.s32.totalorder %s46, 3
      %p300 = por %p298, %p299
      %p301 = scmp.ne.s32.totalorder %s292, %s293
      %p302 = scmp.eq.s32.totalorder %s46, 0
      %p303 = por %p301, %p302
      %p304 = scmp.ne.s32.totalorder %s292, %s293
      %p305 = scmp.eq.s32.totalorder %s47, 3
      %p306 = por %p304, %p305
      %p308 = scmp.ne.s32.totalorder %s293, %s307
      %p309 = scmp.eq.s32.totalorder %s47, 0
      %p310 = por %p308, %p309
      %s312 = sadd.s32 %s311, 1
      %p315 = scmp.eq.s32.totalorder %s41, 3
      %p316 = scmp.ne.s32.totalorder %s311, %s313
      %p317 = scmp.eq.s32.totalorder %s41, 0
      %p318 = por %p316, %p317
      %p319 = scmp.ne.s32.totalorder %s311, %s313
      %p320 = scmp.eq.s32.totalorder %s46, 3
      %p321 = por %p319, %p320
      %p322 = scmp.ne.s32.totalorder %s313, %s314
      %p323 = scmp.eq.s32.totalorder %s46, 0
      %p324 = por %p322, %p323
      %p325 = scmp.ne.s32.totalorder %s313, %s314
      %p326 = scmp.eq.s32.totalorder %s47, 3
      %p327 = por %p325, %p326
      %p329 = scmp.ne.s32.totalorder %s314, %s328
      %p330 = scmp.eq.s32.totalorder %s47, 0
      %p331 = por %p329, %p330
      %p332 = scmp.le.s32.totalorder 1, %s41
      %p333 = scmp.lt.s32.totalorder %s41, 5
      %p334 = pnand %p332, %p333
      %p335 = pneg %p334
      // Predicated region
      $region9: #{tpu_custom_call.1} parent=5 // pred_check
        _
      $region10: #{tpu_custom_call.1} parent=5 // pred_check_branch
        %337 = sbr.rel (%p334) target = $region12
      $region11: #{tpu_custom_call.1} parent=5 // pred_region
        %s338 = ssub.s32 %s41, 1
        // Predicated region
        $region13: #{tpu_custom_call.1} parent=11 // pred_check
          %p339 = pneg %p62
        $region14: #{tpu_custom_call.1} parent=11 // pred_check_branch
          %341 = sbr.rel (%p339) target = $region16
        $region15: #{tpu_custom_call.1} parent=11 // pred_region
          %s343 = ssub.s32 2048, 2048
          %344 = vsyncadd [#allocation11], %s343
          %s345 = sshll.u32 [#allocation10], 4
          %s346 = int_to_ptr.vmem [resolvable:$true] %s345
          %351 = dma.hbm_to_vmem [thread:$0]  %s4, 2048, %s346, [#allocation11], 128, 128, 8
        $region16: #{tpu_custom_call.1} parent=11 // pred_fallthru
          _
        // Predicated region
        $region17: #{tpu_custom_call.1} parent=11 // pred_check
          %p352 = pneg %p135
        $region18: #{tpu_custom_call.1} parent=11 // pred_check_branch
          %354 = sbr.rel (%p352) target = $region20
        $region19: #{tpu_custom_call.1} parent=11 // pred_region
          _
        $region20: #{tpu_custom_call.1} parent=11 // pred_fallthru
          _
        // Predicated region
        $region21: #{tpu_custom_call.1} parent=11 // pred_check
          %p355 = pneg %p156
        $region22: #{tpu_custom_call.1} parent=11 // pred_check_branch
          %357 = sbr.rel (%p355) target = $region24
        $region23: #{tpu_custom_call.1} parent=11 // pred_region
          %s359 = ssub.s32 1024, 1024
          %360 = vsyncadd [#allocation14], %s359
          %s361 = sshll.u32 [#allocation13], 4
          %s362 = int_to_ptr.vmem [resolvable:$true] %s361
          %367 = dma.hbm_to_vmem [thread:$0]  %s8, 1024, %s362, [#allocation14], 64, 64, 4
        $region24: #{tpu_custom_call.1} parent=11 // pred_fallthru
          _
        // Predicated region
        $region25: #{tpu_custom_call.1} parent=11 // pred_check
          %p368 = pneg %p177
        $region26: #{tpu_custom_call.1} parent=11 // pred_check_branch
          %370 = sbr.rel (%p368) target = $region28
        $region27: #{tpu_custom_call.1} parent=11 // pred_region
          %s372 = ssub.s32 1024, 1024
          %373 = vsyncadd [#allocation14], %s372
          %s374 = sshll.u32 [#allocation15], 4
          %s375 = int_to_ptr.vmem [resolvable:$true] %s374
          %380 = dma.hbm_to_vmem [thread:$0]  %s9, 1024, %s375, [#allocation14], 64, 64, 4
        $region28: #{tpu_custom_call.1} parent=11 // pred_fallthru
          _
        // Predicated region
        $region29: #{tpu_custom_call.1} parent=11 // pred_check
          %p381 = pneg %p198
        $region30: #{tpu_custom_call.1} parent=11 // pred_check_branch
          %383 = sbr.rel (%p381) target = $region32
        $region31: #{tpu_custom_call.1} parent=11 // pred_region
          %s385 = ssub.s32 16, 16
          %386 = vsyncadd [#allocation17], %s385
          %s388 = sshll.u32 [#allocation16], 4
          %s389 = int_to_ptr.vmem [resolvable:$true] %s388
          %391 = dma.hbm_to_vmem [thread:$0]  %s10, 16, %s389, [#allocation17]
        $region32: #{tpu_custom_call.1} parent=11 // pred_fallthru
          _
        // Predicated region
        $region33: #{tpu_custom_call.1} parent=11 // pred_check
          %p392 = pneg %p219
        $region34: #{tpu_custom_call.1} parent=11 // pred_check_branch
          %394 = sbr.rel (%p392) target = $region36
        $region35: #{tpu_custom_call.1} parent=11 // pred_region
          %s396 = ssub.s32 1024, 1024
          %397 = vsyncadd [#allocation17], %s396
          %s398 = sshll.u32 [#allocation18], 4
          %s399 = int_to_ptr.vmem [resolvable:$true] %s398
          %404 = dma.hbm_to_vmem [thread:$0]  %s11, 1024, %s399, [#allocation17], 64, 64, 4
        $region36: #{tpu_custom_call.1} parent=11 // pred_fallthru
          _
        // Predicated region
        $region37: #{tpu_custom_call.1} parent=11 // pred_check
          %p405 = pneg %p240
        $region38: #{tpu_custom_call.1} parent=11 // pred_check_branch
          %407 = sbr.rel (%p405) target = $region40
        $region39: #{tpu_custom_call.1} parent=11 // pred_region
          %s409 = ssub.s32 1024, 1024
          %410 = vsyncadd [#allocation20], %s409
          %s411 = sshll.u32 [#allocation19], 4
          %s412 = int_to_ptr.vmem [resolvable:$true] %s411
          %417 = dma.hbm_to_vmem [thread:$0]  %s12, 1024, %s412, [#allocation20], 64, 64, 4
        $region40: #{tpu_custom_call.1} parent=11 // pred_fallthru
          _
        // Predicated region
        $region41: #{tpu_custom_call.1} parent=11 // pred_check
          %p418 = pneg %p261
        $region42: #{tpu_custom_call.1} parent=11 // pred_check_branch
          %420 = sbr.rel (%p418) target = $region44
        $region43: #{tpu_custom_call.1} parent=11 // pred_region
          %s422 = ssub.s32 16, 16
          %423 = vsyncadd [#allocation20], %s422
          %s425 = sshll.u32 [#allocation21], 4
          %s426 = int_to_ptr.vmem [resolvable:$true] %s425
          %428 = dma.hbm_to_vmem [thread:$0]  %s13, 16, %s426, [#allocation20]
        $region44: #{tpu_custom_call.1} parent=11 // pred_fallthru
          _
        // Predicated region
        $region45: #{tpu_custom_call.1} parent=11 // pred_check
          %p429 = pneg %p282
        $region46: #{tpu_custom_call.1} parent=11 // pred_check_branch
          %431 = sbr.rel (%p429) target = $region48
        $region47: #{tpu_custom_call.1} parent=11 // pred_region
          _
        $region48: #{tpu_custom_call.1} parent=11 // pred_fallthru
          _
        // Predicated region
        $region49: #{tpu_custom_call.1} parent=11 // pred_check
          %p432 = pneg %p303
        $region50: #{tpu_custom_call.1} parent=11 // pred_check_branch
          %434 = sbr.rel (%p432) target = $region52
        $region51: #{tpu_custom_call.1} parent=11 // pred_region
          _
        $region52: #{tpu_custom_call.1} parent=11 // pred_fallthru
          _
      $region12: #{tpu_custom_call.1} parent=5 // pred_fallthru
        _
      %p435 = scmp.lt.s32.totalorder %s41, 4
      // Predicated region
      $region53: #{tpu_custom_call.1} parent=5 // pred_check
        %p436 = pneg %p435
      $region54: #{tpu_custom_call.1} parent=5 // pred_check_branch
        %438 = sbr.rel (%p436) target = $region56
      $region55: #{tpu_custom_call.1} parent=5 // pred_region
        // Predicated region
        $region57: #{tpu_custom_call.1} parent=55 // pred_check
          %p439 = pneg %p82
        $region58: #{tpu_custom_call.1} parent=55 // pred_check_branch
          %441 = sbr.rel (%p439) target = $region60
        $region59: #{tpu_custom_call.1} parent=55 // pred_region
          %s442 = smul.u32 2, %s41
          %p443 = scmp.lt.s32.totalorder %s442, 7
          %s444 = scalar_select %p443, %s442, 7
          %s445 = smul.addr %s444, 8
          %s446 = scalar_lea.vmem %s5, %s445
          %s447 = smul.u32 2, %s41
        $region60: #{tpu_custom_call.1} parent=55 // pred_fallthru
          _
        // Predicated region
        $region61: #{tpu_custom_call.1} parent=55 // pred_check
          %p448 = pneg %p108
        $region62: #{tpu_custom_call.1} parent=55 // pred_check_branch
          %450 = sbr.rel (%p448) target = $region64
        $region63: #{tpu_custom_call.1} parent=55 // pred_region
          %s451 = smul.u32 2, %s41
          %p452 = scmp.lt.s32.totalorder %s451, 7
          %s453 = scalar_select %p452, %s451, 7
          %s454 = smul.addr %s453, 8
          %s455 = scalar_lea.vmem %s6, %s454
          %s456 = smul.u32 2, %s41
        $region64: #{tpu_custom_call.1} parent=55 // pred_fallthru
          _
      $region56: #{tpu_custom_call.1} parent=5 // pred_fallthru
        _
      %p457 = scmp.le.s32.totalorder 1, %s41
      %p458 = scmp.lt.s32.totalorder %s41, 5
      %p459 = pnand %p457, %p458
      %p460 = pneg %p459
      // Predicated region
      $region65: #{tpu_custom_call.1} parent=5 // pred_check
        _
      $region66: #{tpu_custom_call.1} parent=5 // pred_check_branch
        %462 = sbr.rel (%p459) target = $region68
      $region67: #{tpu_custom_call.1} parent=5 // pred_region
        %s463 = ssub.s32 %s41, 1
        // Predicated region
        $region69: #{tpu_custom_call.1} parent=67 // pred_check
          %p464 = pneg %p62
        $region70: #{tpu_custom_call.1} parent=67 // pred_check_branch
          %466 = sbr.rel (%p464) target = $region72
        $region71: #{tpu_custom_call.1} parent=67 // pred_region
          %467 = dma.done [#allocation11], 2048
        $region72: #{tpu_custom_call.1} parent=67 // pred_fallthru
          _
        // Predicated region
        $region73: #{tpu_custom_call.1} parent=67 // pred_check
          %p468 = pneg %p156
        $region74: #{tpu_custom_call.1} parent=67 // pred_check_branch
          %470 = sbr.rel (%p468) target = $region76
        $region75: #{tpu_custom_call.1} parent=67 // pred_region
          %471 = dma.done [#allocation14], 1024
        $region76: #{tpu_custom_call.1} parent=67 // pred_fallthru
          _
        // Predicated region
        $region77: #{tpu_custom_call.1} parent=67 // pred_check
          %p472 = pneg %p177
        $region78: #{tpu_custom_call.1} parent=67 // pred_check_branch
          %474 = sbr.rel (%p472) target = $region80
        $region79: #{tpu_custom_call.1} parent=67 // pred_region
          %475 = dma.done [#allocation14], 1024
        $region80: #{tpu_custom_call.1} parent=67 // pred_fallthru
          _
        // Predicated region
        $region81: #{tpu_custom_call.1} parent=67 // pred_check
          %p476 = pneg %p198
        $region82: #{tpu_custom_call.1} parent=67 // pred_check_branch
          %478 = sbr.rel (%p476) target = $region84
        $region83: #{tpu_custom_call.1} parent=67 // pred_region
          %479 = dma.done [#allocation17], 16
        $region84: #{tpu_custom_call.1} parent=67 // pred_fallthru
          _
        // Predicated region
        $region85: #{tpu_custom_call.1} parent=67 // pred_check
          %p480 = pneg %p219
        $region86: #{tpu_custom_call.1} parent=67 // pred_check_branch
          %482 = sbr.rel (%p480) target = $region88
        $region87: #{tpu_custom_call.1} parent=67 // pred_region
          %483 = dma.done [#allocation17], 1024
        $region88: #{tpu_custom_call.1} parent=67 // pred_fallthru
          _
        // Predicated region
        $region89: #{tpu_custom_call.1} parent=67 // pred_check
          %p484 = pneg %p240
        $region90: #{tpu_custom_call.1} parent=67 // pred_check_branch
          %486 = sbr.rel (%p484) target = $region92
        $region91: #{tpu_custom_call.1} parent=67 // pred_region
          %487 = dma.done [#allocation20], 1024
        $region92: #{tpu_custom_call.1} parent=67 // pred_fallthru
          _
        // Predicated region
        $region93: #{tpu_custom_call.1} parent=67 // pred_check
          %p488 = pneg %p261
        $region94: #{tpu_custom_call.1} parent=67 // pred_check_branch
          %490 = sbr.rel (%p488) target = $region96
        $region95: #{tpu_custom_call.1} parent=67 // pred_region
          %491 = dma.done [#allocation20], 16
        $region96: #{tpu_custom_call.1} parent=67 // pred_fallthru
          _
        %p492 = pneg %p62
        %p493 = pneg %p59
        %s494 = smul.u32 2, %s46
        %p495 = scmp.lt.s32.totalorder %s494, 7
        %s496 = scalar_select %p495, %s494, 7
        %s497 = smul.addr %s496, 8
        %s498 = scalar_lea.vmem %s5, %s497
        %p499 = pneg %p88
        %p500 = pneg %p85
        %s501 = smul.u32 2, %s46
        %p502 = scmp.lt.s32.totalorder %s501, 7
        %s503 = scalar_select %p502, %s501, 7
        %s504 = smul.addr %s503, 8
        %s505 = scalar_lea.vmem %s6, %s504
        %p506 = pneg %p114
        %p507 = pneg %p111
        %p508 = pneg %p135
        %p509 = pneg %p132
        %p510 = pneg %p156
        %p511 = pneg %p153
        %p512 = pneg %p177
        %p513 = pneg %p174
        %p514 = pneg %p198
        %p515 = pneg %p195
        %p516 = pneg %p219
        %p517 = pneg %p216
        %p518 = pneg %p240
        %p519 = pneg %p237
        %p520 = pneg %p261
        %p521 = pneg %p258
        %p522 = pneg %p282
        %p523 = pneg %p279
        %p524 = pneg %p303
        %p525 = pneg %p300
        %p526 = pneg %p324
        %p527 = pneg %p321
        %s528 = smul.u32 2, %s46
        %p529 = scmp.lt.s32.totalorder %s528, 7
        %s530 = scalar_select %p529, %s528, 7
        %s531 = smul.addr %s530, 8
        %s532 = scalar_lea.vmem %s5, %s531
        %s533 = smul.u32 2, %s46
        %s534 = smul.u32 2, %s46
        %p535 = scmp.lt.s32.totalorder %s534, 7
        %s536 = scalar_select %p535, %s534, 7
        %s537 = smul.addr %s536, 8
        %s538 = scalar_lea.vmem %s6, %s537
        %s539 = smul.u32 2, %s46
        %s541 = smul.u32 %s46, 16
        loop: start=0, step=1, limit=16
        $region97: #{tpu_custom_call.1} parent=67 // loop_pre_header
          _
        $region98: #{tpu_custom_call.1} parent=67 // loop_header
          %s543 = sphi 0, %s547
          %p544 = scmp.ge.s32.totalorder %s543, 16
        $region99: #{tpu_custom_call.1} parent=67 // loop_header_branch
          %546 = sbr.rel (%p544) target = $region103
        $region100: #{tpu_custom_call.1} parent=67 // loop_body
          %s548 = sadd.s32 %s541, %s543
          %s549 = sld [smem:[#allocation6 + %s548]]
          %s550 = sadd.s32 %s548, 1
          %s551 = sld [smem:[#allocation6 + %s550]]
          // While loop
          $region104: #{tpu_custom_call.1} parent=100 // loop_pre_header
            _
          $region105: #{tpu_custom_call.1} parent=100 // loop_header
            %s553 = sphi %s549, %s555
            %p554 = scmp.ge.s32.totalorder %s553, %s551
            %v558 = vphi 0.0, %v562
          $region106: #{tpu_custom_call.1} parent=100 // loop_header_branch
            %557 = sbr.rel (%p554) target = $region110
          $region107: #{tpu_custom_call.1} parent=100 // loop_body
            %s559 = sld [smem:[#allocation7 + %s553]]
            %s560 = scalar_lea.vmem [#allocation10], %s559
            %v561 = vld [vmem:[%s560] sm:$0x1]
            %v562 = vadd.f32 %v558, %v561
          $region108: #{tpu_custom_call.1} parent=100 // loop_footer
            %s555 = sadd.s32 %s553, 1
          $region109: #{tpu_custom_call.1} parent=100 // loop_footer_branch
            %552 = sbr.rel target = $region105
          $region110: #{tpu_custom_call.1} parent=100 // loop_exit
            _
          %s563 = scalar_lea.vmem [#allocation2], %s543
          %564 = vst [vmem:[%s563] sm:$0x1] %v558
        $region101: #{tpu_custom_call.1} parent=67 // loop_footer
          %s547 = sadd.s32 1, %s543
        $region102: #{tpu_custom_call.1} parent=67 // loop_footer_branch
          %542 = sbr.rel target = $region98
        $region103: #{tpu_custom_call.1} parent=67 // loop_exit
          _
        %v565 = vld [vmem:[%s538] sm:$0xff]
        %v566 = vld [vmem:[%s538 + $0x8] sm:$0xff]
        %v567 = vmax.f32 %v565, 1.0
        %v568 = vmax.f32 %v566, 1.0
        %v569 = vrcp.pop %v567
        %v570 = vrcp.pop %v568
        %v571 = vld [vmem:[#allocation2] sm:$0xff]
        %v572 = vld [vmem:[#allocation2 + $0x8] sm:$0xff]
        %574 = vset.pattern.permute.xlu0 0
        %575 = vperm.xlu0 %574, %v569
        %v576 = vpop.permute.xlu0 %575
        %579 = vset.pattern.permute.xlu0 0
        %580 = vperm.xlu0 %579, %v570
        %v581 = vpop.permute.xlu0 %580
        %v583 = vmul.f32 %v571, %v576
        %v584 = vmul.f32 %v572, %v581
        %v585 = vpack.c.bf16 %v584, %v583
        %v586 = vld [vmem:[#allocation13] sm:$0xf]
        %v587 = vld [vmem:[#allocation13 + $0x4] sm:$0xf]
        %v588 = vld [vmem:[#allocation13 + $0x8] sm:$0xf]
        %v589 = vld [vmem:[#allocation13 + $0xc] sm:$0xf]
        %v590 = vld [vmem:[#allocation13 + $0x10] sm:$0xf]
        %v591 = vld [vmem:[#allocation13 + $0x14] sm:$0xf]
        %v592 = vld [vmem:[#allocation13 + $0x18] sm:$0xf]
        %v593 = vld [vmem:[#allocation13 + $0x1c] sm:$0xf]
        %v594 = vld [vmem:[#allocation13 + $0x20] sm:$0xf]
        %v595 = vld [vmem:[#allocation13 + $0x24] sm:$0xf]
        %v596 = vld [vmem:[#allocation13 + $0x28] sm:$0xf]
        %v597 = vld [vmem:[#allocation13 + $0x2c] sm:$0xf]
        %v598 = vld [vmem:[#allocation13 + $0x30] sm:$0xf]
        %v599 = vld [vmem:[#allocation13 + $0x34] sm:$0xf]
        %v600 = vld [vmem:[#allocation13 + $0x38] sm:$0xf]
        %v601 = vld [vmem:[#allocation13 + $0x3c] sm:$0xf]
        %v602 = vld [vmem:[%s532] sm:$0xff]
        %v603 = vld [vmem:[%s532 + $0x8] sm:$0xff]
        %v604 = vpack.c.bf16 %v603, %v602
        %v605 = vld [vmem:[#allocation15] sm:$0xf]
        %v606 = vld [vmem:[#allocation15 + $0x4] sm:$0xf]
        %v607 = vld [vmem:[#allocation15 + $0x8] sm:$0xf]
        %v608 = vld [vmem:[#allocation15 + $0xc] sm:$0xf]
        %v609 = vld [vmem:[#allocation15 + $0x10] sm:$0xf]
        %v610 = vld [vmem:[#allocation15 + $0x14] sm:$0xf]
        %v611 = vld [vmem:[#allocation15 + $0x18] sm:$0xf]
        %v612 = vld [vmem:[#allocation15 + $0x1c] sm:$0xf]
        %v613 = vld [vmem:[#allocation15 + $0x20] sm:$0xf]
        %v614 = vld [vmem:[#allocation15 + $0x24] sm:$0xf]
        %v615 = vld [vmem:[#allocation15 + $0x28] sm:$0xf]
        %v616 = vld [vmem:[#allocation15 + $0x2c] sm:$0xf]
        %v617 = vld [vmem:[#allocation15 + $0x30] sm:$0xf]
        %v618 = vld [vmem:[#allocation15 + $0x34] sm:$0xf]
        %v619 = vld [vmem:[#allocation15 + $0x38] sm:$0xf]
        %v620 = vld [vmem:[#allocation15 + $0x3c] sm:$0xf]
        %v637 = vunpack.c.l.b16 %v605
        %v638 = vunpack.c.l.b16 %v606
        %v639 = vunpack.c.l.b16 %v607
        %v640 = vunpack.c.l.b16 %v608
        %v641 = vunpack.c.l.b16 %v609
        %v642 = vunpack.c.l.b16 %v610
        %v643 = vunpack.c.l.b16 %v611
        %v644 = vunpack.c.l.b16 %v612
        %v645 = vunpack.c.l.b16 %v613
        %v646 = vunpack.c.l.b16 %v614
        %v647 = vunpack.c.l.b16 %v615
        %v648 = vunpack.c.l.b16 %v616
        %v649 = vunpack.c.l.b16 %v617
        %v650 = vunpack.c.l.b16 %v618
        %v651 = vunpack.c.l.b16 %v619
        %v652 = vunpack.c.l.b16 %v620
        %v653 = vpack.c.b16 %v638, %v637
        %v654 = vpack.c.b16 %v640, %v639
        %v655 = vpack.c.b16 %v642, %v641
        %v656 = vpack.c.b16 %v644, %v643
        %v657 = vpack.c.b16 %v646, %v645
        %v658 = vpack.c.b16 %v648, %v647
        %v659 = vpack.c.b16 %v650, %v649
        %v660 = vpack.c.b16 %v652, %v651
        %669 = vmatprep.subr.bf16.mxu0 0
        %670 = vmatpush1.bf16.msra.mxu0 %v653
        %671 = vmatprep.subr.bf16.mxu0 0
        %672 = vmatpush1.bf16.msra.mxu0 %v654
        %673 = vmatprep.subr.bf16.mxu0 0
        %674 = vmatpush1.bf16.msra.mxu0 %v655
        %675 = vmatprep.subr.bf16.mxu0 0
        %676 = vmatpush1.bf16.msra.mxu0 %v656
        %677 = vmatprep.subr.bf16.mxu0 0
        %678 = vmatpush1.bf16.msra.mxu0 %v657
        %679 = vmatprep.subr.bf16.mxu0 0
        %680 = vmatpush1.bf16.msra.mxu0 %v658
        %681 = vmatprep.subr.bf16.mxu0 0
        %682 = vmatpush1.bf16.msra.mxu0 %v659
        %683 = vmatprep.subr.bf16.mxu0 0
        %684 = vmatpush1.bf16.msra.mxu0 %v660
        %685 = vmatprep.subr.bf16.mxu0 0
        %686 = vmatpush1.bf16.msra.mxu0 0
        %687 = vmatprep.subr.bf16.mxu0 0
        %688 = vmatpush1.bf16.msra.mxu0 0
        %689 = vmatprep.subr.bf16.mxu0 0
        %690 = vmatpush1.bf16.msra.mxu0 0
        %691 = vmatprep.subr.bf16.mxu0 0
        %692 = vmatpush1.bf16.msra.mxu0 0
        %693 = vmatprep.subr.bf16.mxu0 0
        %694 = vmatpush1.bf16.msra.mxu0 0
        %695 = vmatprep.subr.bf16.mxu0 0
        %696 = vmatpush1.bf16.msra.mxu0 0
        %697 = vmatprep.subr.bf16.mxu0 0
        %698 = vmatpush1.bf16.msra.mxu0 0
        %699 = vmatprep.subr.bf16.mxu0 0
        %700 = vmatpush1.bf16.msra.mxu0 0
        %701 = vmatprep.mubr.bf16.mxu0 0
        %702 = vmatmul.mubr.bf16.gmra.mrb[0].mxu0 %v604
        %v703 = vpop.f32.mrb[0].mxu0
        %v704 = vadd.f32 0.0, %v703
        %v705 = vpop.f32.mrb[0].mxu0
        %v706 = vpop.f32.mrb[0].mxu0
        %v707 = vadd.f32 0.0, %v706
        %v708 = vpop.f32.mrb[0].mxu0
        %709 = vdwg.mxu0
        %v726 = vunpack.c.l.b16 %v586
        %v727 = vunpack.c.l.b16 %v587
        %v728 = vunpack.c.l.b16 %v588
        %v729 = vunpack.c.l.b16 %v589
        %v730 = vunpack.c.l.b16 %v590
        %v731 = vunpack.c.l.b16 %v591
        %v732 = vunpack.c.l.b16 %v592
        %v733 = vunpack.c.l.b16 %v593
        %v734 = vunpack.c.l.b16 %v594
        %v735 = vunpack.c.l.b16 %v595
        %v736 = vunpack.c.l.b16 %v596
        %v737 = vunpack.c.l.b16 %v597
        %v738 = vunpack.c.l.b16 %v598
        %v739 = vunpack.c.l.b16 %v599
        %v740 = vunpack.c.l.b16 %v600
        %v741 = vunpack.c.l.b16 %v601
        %v742 = vpack.c.b16 %v727, %v726
        %v743 = vpack.c.b16 %v729, %v728
        %v744 = vpack.c.b16 %v731, %v730
        %v745 = vpack.c.b16 %v733, %v732
        %v746 = vpack.c.b16 %v735, %v734
        %v747 = vpack.c.b16 %v737, %v736
        %v748 = vpack.c.b16 %v739, %v738
        %v749 = vpack.c.b16 %v741, %v740
        %758 = vmatprep.subr.bf16.mxu0 0
        %759 = vmatpush1.bf16.msra.mxu0 %v742
        %760 = vmatprep.subr.bf16.mxu0 0
        %761 = vmatpush1.bf16.msra.mxu0 %v743
        %762 = vmatprep.subr.bf16.mxu0 0
        %763 = vmatpush1.bf16.msra.mxu0 %v744
        %764 = vmatprep.subr.bf16.mxu0 0
        %765 = vmatpush1.bf16.msra.mxu0 %v745
        %766 = vmatprep.subr.bf16.mxu0 0
        %767 = vmatpush1.bf16.msra.mxu0 %v746
        %768 = vmatprep.subr.bf16.mxu0 0
        %769 = vmatpush1.bf16.msra.mxu0 %v747
        %770 = vmatprep.subr.bf16.mxu0 0
        %771 = vmatpush1.bf16.msra.mxu0 %v748
        %772 = vmatprep.subr.bf16.mxu0 0
        %773 = vmatpush1.bf16.msra.mxu0 %v749
        %774 = vmatprep.subr.bf16.mxu0 0
        %775 = vmatpush1.bf16.msra.mxu0 0
        %776 = vmatprep.subr.bf16.mxu0 0
        %777 = vmatpush1.bf16.msra.mxu0 0
        %778 = vmatprep.subr.bf16.mxu0 0
        %779 = vmatpush1.bf16.msra.mxu0 0
        %780 = vmatprep.subr.bf16.mxu0 0
        %781 = vmatpush1.bf16.msra.mxu0 0
        %782 = vmatprep.subr.bf16.mxu0 0
        %783 = vmatpush1.bf16.msra.mxu0 0
        %784 = vmatprep.subr.bf16.mxu0 0
        %785 = vmatpush1.bf16.msra.mxu0 0
        %786 = vmatprep.subr.bf16.mxu0 0
        %787 = vmatpush1.bf16.msra.mxu0 0
        %788 = vmatprep.subr.bf16.mxu0 0
        %789 = vmatpush1.bf16.msra.mxu0 0
        %790 = vmatprep.mubr.bf16.mxu0 0
        %791 = vmatmul.mubr.bf16.gmra.mrb[0].mxu0 %v585
        %v792 = vpop.f32.mrb[0].mxu0
        %v793 = vadd.f32 %v704, %v792
        %v794 = vpop.f32.mrb[0].mxu0
        %v795 = vpop.f32.mrb[0].mxu0
        %v796 = vadd.f32 %v707, %v795
        %v797 = vpop.f32.mrb[0].mxu0
        %798 = vdwg.mxu0
        %v799 = vld [vmem:[#allocation16] sm:$0x1]
        %v801 = vlaneseq
        %v802 = vshrl.u32 %v801, 7
        %v803 = vsub.s32 0, %v802
        %v804 = vrot.slane %v799, %v803
        %v806 = vadd.f32 %v793, %v804
        %v807 = vadd.f32 %v796, %v804
        %v808 = vmax.f32 %v806, 0.0
        %v809 = vmax.f32 %v807, 0.0
        %s810 = scalar_lea.vmem [#allocation3], %s541
        %811 = vst [vmem:[%s810] sm:$0xff] %v808
        %812 = vst [vmem:[%s810 + $0x8] sm:$0xff] %v809
        %p813 = scmp.eq.s32.totalorder %s46, 3
        // Predicated region
        $region111: #{tpu_custom_call.1} parent=67 // pred_check
          %p814 = pneg %p813
        $region112: #{tpu_custom_call.1} parent=67 // pred_check_branch
          %816 = sbr.rel (%p814) target = $region114
        $region113: #{tpu_custom_call.1} parent=67 // pred_region
          loop: start=0, step=1, limit=16
          $region115: #{tpu_custom_call.1} parent=113 // loop_pre_header
            _
          $region116: #{tpu_custom_call.1} parent=113 // loop_header
            %s818 = sphi 0, %s822
            %p819 = scmp.ge.s32.totalorder %s818, 16
          $region117: #{tpu_custom_call.1} parent=113 // loop_header_branch
            %821 = sbr.rel (%p819) target = $region121
          $region118: #{tpu_custom_call.1} parent=113 // loop_body
            %s823 = sld [smem:[#allocation8 + %s818]]
            %s824 = sadd.s32 %s818, 1
            %s825 = sld [smem:[#allocation8 + %s824]]
            // While loop
            $region122: #{tpu_custom_call.1} parent=118 // loop_pre_header
              _
            $region123: #{tpu_custom_call.1} parent=118 // loop_header
              %s827 = sphi %s823, %s829
              %p828 = scmp.ge.s32.totalorder %s827, %s825
              %v832 = vphi 0.0, %v836
            $region124: #{tpu_custom_call.1} parent=118 // loop_header_branch
              %831 = sbr.rel (%p828) target = $region128
            $region125: #{tpu_custom_call.1} parent=118 // loop_body
              %s833 = sld [smem:[#allocation9 + %s827]]
              %s834 = scalar_lea.vmem [#allocation3], %s833
              %v835 = vld [vmem:[%s834] sm:$0x1]
              %v836 = vadd.f32 %v832, %v835
            $region126: #{tpu_custom_call.1} parent=118 // loop_footer
              %s829 = sadd.s32 %s827, 1
            $region127: #{tpu_custom_call.1} parent=118 // loop_footer_branch
              %826 = sbr.rel target = $region123
            $region128: #{tpu_custom_call.1} parent=118 // loop_exit
              _
            %s837 = scalar_lea.vmem [#allocation4], %s818
            %838 = vst [vmem:[%s837] sm:$0x1] %v832
          $region119: #{tpu_custom_call.1} parent=113 // loop_footer
            %s822 = sadd.s32 1, %s818
          $region120: #{tpu_custom_call.1} parent=113 // loop_footer_branch
            %817 = sbr.rel target = $region116
          $region121: #{tpu_custom_call.1} parent=113 // loop_exit
            _
          %v839 = vld [vmem:[%s7] sm:$0xff]
          %v840 = vld [vmem:[%s7 + $0x8] sm:$0xff]
          %v841 = vmax.f32 %v839, 1.0
          %v842 = vmax.f32 %v840, 1.0
          %v843 = vrcp.pop %v841
          %v844 = vrcp.pop %v842
          %v845 = vld [vmem:[#allocation4] sm:$0xff]
          %v846 = vld [vmem:[#allocation4 + $0x8] sm:$0xff]
          %848 = vset.pattern.permute.xlu0 0
          %849 = vperm.xlu0 %848, %v843
          %v850 = vpop.permute.xlu0 %849
          %853 = vset.pattern.permute.xlu0 0
          %854 = vperm.xlu0 %853, %v844
          %v855 = vpop.permute.xlu0 %854
          %v857 = vmul.f32 %v845, %v850
          %v858 = vmul.f32 %v846, %v855
          %v859 = vld [vmem:[#allocation3] sm:$0xff]
          %v860 = vld [vmem:[#allocation3 + $0x8] sm:$0xff]
          %v861 = vpack.c.bf16 %v858, %v857
          %v862 = vld [vmem:[#allocation18] sm:$0xf]
          %v863 = vld [vmem:[#allocation18 + $0x4] sm:$0xf]
          %v864 = vld [vmem:[#allocation18 + $0x8] sm:$0xf]
          %v865 = vld [vmem:[#allocation18 + $0xc] sm:$0xf]
          %v866 = vld [vmem:[#allocation18 + $0x10] sm:$0xf]
          %v867 = vld [vmem:[#allocation18 + $0x14] sm:$0xf]
          %v868 = vld [vmem:[#allocation18 + $0x18] sm:$0xf]
          %v869 = vld [vmem:[#allocation18 + $0x1c] sm:$0xf]
          %v870 = vld [vmem:[#allocation18 + $0x20] sm:$0xf]
          %v871 = vld [vmem:[#allocation18 + $0x24] sm:$0xf]
          %v872 = vld [vmem:[#allocation18 + $0x28] sm:$0xf]
          %v873 = vld [vmem:[#allocation18 + $0x2c] sm:$0xf]
          %v874 = vld [vmem:[#allocation18 + $0x30] sm:$0xf]
          %v875 = vld [vmem:[#allocation18 + $0x34] sm:$0xf]
          %v876 = vld [vmem:[#allocation18 + $0x38] sm:$0xf]
          %v877 = vld [vmem:[#allocation18 + $0x3c] sm:$0xf]
          %v878 = vpack.c.bf16 %v860, %v859
          %v879 = vld [vmem:[#allocation19] sm:$0xf]
          %v880 = vld [vmem:[#allocation19 + $0x4] sm:$0xf]
          %v881 = vld [vmem:[#allocation19 + $0x8] sm:$0xf]
          %v882 = vld [vmem:[#allocation19 + $0xc] sm:$0xf]
          %v883 = vld [vmem:[#allocation19 + $0x10] sm:$0xf]
          %v884 = vld [vmem:[#allocation19 + $0x14] sm:$0xf]
          %v885 = vld [vmem:[#allocation19 + $0x18] sm:$0xf]
          %v886 = vld [vmem:[#allocation19 + $0x1c] sm:$0xf]
          %v887 = vld [vmem:[#allocation19 + $0x20] sm:$0xf]
          %v888 = vld [vmem:[#allocation19 + $0x24] sm:$0xf]
          %v889 = vld [vmem:[#allocation19 + $0x28] sm:$0xf]
          %v890 = vld [vmem:[#allocation19 + $0x2c] sm:$0xf]
          %v891 = vld [vmem:[#allocation19 + $0x30] sm:$0xf]
          %v892 = vld [vmem:[#allocation19 + $0x34] sm:$0xf]
          %v893 = vld [vmem:[#allocation19 + $0x38] sm:$0xf]
          %v894 = vld [vmem:[#allocation19 + $0x3c] sm:$0xf]
          %v911 = vunpack.c.l.b16 %v879
          %v912 = vunpack.c.l.b16 %v880
          %v913 = vunpack.c.l.b16 %v881
          %v914 = vunpack.c.l.b16 %v882
          %v915 = vunpack.c.l.b16 %v883
          %v916 = vunpack.c.l.b16 %v884
          %v917 = vunpack.c.l.b16 %v885
          %v918 = vunpack.c.l.b16 %v886
          %v919 = vunpack.c.l.b16 %v887
          %v920 = vunpack.c.l.b16 %v888
          %v921 = vunpack.c.l.b16 %v889
          %v922 = vunpack.c.l.b16 %v890
          %v923 = vunpack.c.l.b16 %v891
          %v924 = vunpack.c.l.b16 %v892
          %v925 = vunpack.c.l.b16 %v893
          %v926 = vunpack.c.l.b16 %v894
          %v927 = vpack.c.b16 %v912, %v911
          %v928 = vpack.c.b16 %v914, %v913
          %v929 = vpack.c.b16 %v916, %v915
          %v930 = vpack.c.b16 %v918, %v917
          %v931 = vpack.c.b16 %v920, %v919
          %v932 = vpack.c.b16 %v922, %v921
          %v933 = vpack.c.b16 %v924, %v923
          %v934 = vpack.c.b16 %v926, %v925
          %943 = vmatprep.subr.bf16.mxu0 0
          %944 = vmatpush1.bf16.msra.mxu0 %v927
          %945 = vmatprep.subr.bf16.mxu0 0
          %946 = vmatpush1.bf16.msra.mxu0 %v928
          %947 = vmatprep.subr.bf16.mxu0 0
          %948 = vmatpush1.bf16.msra.mxu0 %v929
          %949 = vmatprep.subr.bf16.mxu0 0
          %950 = vmatpush1.bf16.msra.mxu0 %v930
          %951 = vmatprep.subr.bf16.mxu0 0
          %952 = vmatpush1.bf16.msra.mxu0 %v931
          %953 = vmatprep.subr.bf16.mxu0 0
          %954 = vmatpush1.bf16.msra.mxu0 %v932
          %955 = vmatprep.subr.bf16.mxu0 0
          %956 = vmatpush1.bf16.msra.mxu0 %v933
          %957 = vmatprep.subr.bf16.mxu0 0
          %958 = vmatpush1.bf16.msra.mxu0 %v934
          %959 = vmatprep.subr.bf16.mxu0 0
          %960 = vmatpush1.bf16.msra.mxu0 0
          %961 = vmatprep.subr.bf16.mxu0 0
          %962 = vmatpush1.bf16.msra.mxu0 0
          %963 = vmatprep.subr.bf16.mxu0 0
          %964 = vmatpush1.bf16.msra.mxu0 0
          %965 = vmatprep.subr.bf16.mxu0 0
          %966 = vmatpush1.bf16.msra.mxu0 0
          %967 = vmatprep.subr.bf16.mxu0 0
          %968 = vmatpush1.bf16.msra.mxu0 0
          %969 = vmatprep.subr.bf16.mxu0 0
          %970 = vmatpush1.bf16.msra.mxu0 0
          %971 = vmatprep.subr.bf16.mxu0 0
          %972 = vmatpush1.bf16.msra.mxu0 0
          %973 = vmatprep.subr.bf16.mxu0 0
          %974 = vmatpush1.bf16.msra.mxu0 0
          %975 = vmatprep.mubr.bf16.mxu0 0
          %976 = vmatmul.mubr.bf16.gmra.mrb[0].mxu0 %v878
          %v977 = vpop.f32.mrb[0].mxu0
          %v978 = vadd.f32 0.0, %v977
          %v979 = vpop.f32.mrb[0].mxu0
          %v980 = vpop.f32.mrb[0].mxu0
          %v981 = vadd.f32 0.0, %v980
          %v982 = vpop.f32.mrb[0].mxu0
          %983 = vdwg.mxu0
          %v1000 = vunpack.c.l.b16 %v862
          %v1001 = vunpack.c.l.b16 %v863
          %v1002 = vunpack.c.l.b16 %v864
          %v1003 = vunpack.c.l.b16 %v865
          %v1004 = vunpack.c.l.b16 %v866
          %v1005 = vunpack.c.l.b16 %v867
          %v1006 = vunpack.c.l.b16 %v868
          %v1007 = vunpack.c.l.b16 %v869
          %v1008 = vunpack.c.l.b16 %v870
          %v1009 = vunpack.c.l.b16 %v871
          %v1010 = vunpack.c.l.b16 %v872
          %v1011 = vunpack.c.l.b16 %v873
          %v1012 = vunpack.c.l.b16 %v874
          %v1013 = vunpack.c.l.b16 %v875
          %v1014 = vunpack.c.l.b16 %v876
          %v1015 = vunpack.c.l.b16 %v877
          %v1016 = vpack.c.b16 %v1001, %v1000
          %v1017 = vpack.c.b16 %v1003, %v1002
          %v1018 = vpack.c.b16 %v1005, %v1004
          %v1019 = vpack.c.b16 %v1007, %v1006
          %v1020 = vpack.c.b16 %v1009, %v1008
          %v1021 = vpack.c.b16 %v1011, %v1010
          %v1022 = vpack.c.b16 %v1013, %v1012
          %v1023 = vpack.c.b16 %v1015, %v1014
          %1032 = vmatprep.subr.bf16.mxu0 0
          %1033 = vmatpush1.bf16.msra.mxu0 %v1016
          %1034 = vmatprep.subr.bf16.mxu0 0
          %1035 = vmatpush1.bf16.msra.mxu0 %v1017
          %1036 = vmatprep.subr.bf16.mxu0 0
          %1037 = vmatpush1.bf16.msra.mxu0 %v1018
          %1038 = vmatprep.subr.bf16.mxu0 0
          %1039 = vmatpush1.bf16.msra.mxu0 %v1019
          %1040 = vmatprep.subr.bf16.mxu0 0
          %1041 = vmatpush1.bf16.msra.mxu0 %v1020
          %1042 = vmatprep.subr.bf16.mxu0 0
          %1043 = vmatpush1.bf16.msra.mxu0 %v1021
          %1044 = vmatprep.subr.bf16.mxu0 0
          %1045 = vmatpush1.bf16.msra.mxu0 %v1022
          %1046 = vmatprep.subr.bf16.mxu0 0
          %1047 = vmatpush1.bf16.msra.mxu0 %v1023
          %1048 = vmatprep.subr.bf16.mxu0 0
          %1049 = vmatpush1.bf16.msra.mxu0 0
          %1050 = vmatprep.subr.bf16.mxu0 0
          %1051 = vmatpush1.bf16.msra.mxu0 0
          %1052 = vmatprep.subr.bf16.mxu0 0
          %1053 = vmatpush1.bf16.msra.mxu0 0
          %1054 = vmatprep.subr.bf16.mxu0 0
          %1055 = vmatpush1.bf16.msra.mxu0 0
          %1056 = vmatprep.subr.bf16.mxu0 0
          %1057 = vmatpush1.bf16.msra.mxu0 0
          %1058 = vmatprep.subr.bf16.mxu0 0
          %1059 = vmatpush1.bf16.msra.mxu0 0
          %1060 = vmatprep.subr.bf16.mxu0 0
          %1061 = vmatpush1.bf16.msra.mxu0 0
          %1062 = vmatprep.subr.bf16.mxu0 0
          %1063 = vmatpush1.bf16.msra.mxu0 0
          %1064 = vmatprep.mubr.bf16.mxu0 0
          %1065 = vmatmul.mubr.bf16.gmra.mrb[0].mxu0 %v861
          %v1066 = vpop.f32.mrb[0].mxu0
          %v1067 = vadd.f32 %v978, %v1066
          %v1068 = vpop.f32.mrb[0].mxu0
          %v1069 = vpop.f32.mrb[0].mxu0
          %v1070 = vadd.f32 %v981, %v1069
          %v1071 = vpop.f32.mrb[0].mxu0
          %1072 = vdwg.mxu0
          %v1073 = vld [vmem:[#allocation21] sm:$0x1]
          %v1075 = vlaneseq
          %v1076 = vshrl.u32 %v1075, 7
          %v1077 = vsub.s32 0, %v1076
          %v1078 = vrot.slane %v1073, %v1077
          %v1080 = vadd.f32 %v1067, %v1078
          %v1081 = vadd.f32 %v1070, %v1078
          %v1082 = vmax.f32 %v1080, 0.0
          %v1083 = vmax.f32 %v1081, 0.0
          %v1084 = vpack.c.bf16 %v1083, %v1082
          %v1085 = vld [vmem:[%s14] sm:$0xf]
          %v1086 = vld [vmem:[%s14 + $0x4] sm:$0xf]
          %v1087 = vld [vmem:[%s14 + $0x8] sm:$0xf]
          %v1088 = vld [vmem:[%s14 + $0xc] sm:$0xf]
          %v1089 = vld [vmem:[%s14 + $0x10] sm:$0xf]
          %v1090 = vld [vmem:[%s14 + $0x14] sm:$0xf]
          %v1091 = vld [vmem:[%s14 + $0x18] sm:$0xf]
          %v1092 = vld [vmem:[%s14 + $0x1c] sm:$0xf]
          %v1093 = vld [vmem:[%s14 + $0x20] sm:$0xf]
          %v1094 = vld [vmem:[%s14 + $0x24] sm:$0xf]
          %v1095 = vld [vmem:[%s14 + $0x28] sm:$0xf]
          %v1096 = vld [vmem:[%s14 + $0x2c] sm:$0xf]
          %v1097 = vld [vmem:[%s14 + $0x30] sm:$0xf]
          %v1098 = vld [vmem:[%s14 + $0x34] sm:$0xf]
          %v1099 = vld [vmem:[%s14 + $0x38] sm:$0xf]
          %v1100 = vld [vmem:[%s14 + $0x3c] sm:$0xf]
          %v1101 = vld [vmem:[%s15] sm:$0x1]
          %v1103 = vlaneseq
          %v1104 = vshrl.u32 %v1103, 7
          %v1105 = vsub.s32 0, %v1104
          %v1106 = vrot.slane %v1101, %v1105
          %v1124 = vunpack.c.l.b16 %v1085
          %v1125 = vunpack.c.l.b16 %v1086
          %v1126 = vunpack.c.l.b16 %v1087
          %v1127 = vunpack.c.l.b16 %v1088
          %v1128 = vunpack.c.l.b16 %v1089
          %v1129 = vunpack.c.l.b16 %v1090
          %v1130 = vunpack.c.l.b16 %v1091
          %v1131 = vunpack.c.l.b16 %v1092
          %v1132 = vunpack.c.l.b16 %v1093
          %v1133 = vunpack.c.l.b16 %v1094
          %v1134 = vunpack.c.l.b16 %v1095
          %v1135 = vunpack.c.l.b16 %v1096
          %v1136 = vunpack.c.l.b16 %v1097
          %v1137 = vunpack.c.l.b16 %v1098
          %v1138 = vunpack.c.l.b16 %v1099
          %v1139 = vunpack.c.l.b16 %v1100
          %v1140 = vpack.c.b16 %v1125, %v1124
          %v1141 = vpack.c.b16 %v1127, %v1126
          %v1142 = vpack.c.b16 %v1129, %v1128
          %v1143 = vpack.c.b16 %v1131, %v1130
          %v1144 = vpack.c.b16 %v1133, %v1132
          %v1145 = vpack.c.b16 %v1135, %v1134
          %v1146 = vpack.c.b16 %v1137, %v1136
          %v1147 = vpack.c.b16 %v1139, %v1138
          %1156 = vmatprep.subr.bf16.mxu0 0
          %1157 = vmatpush1.bf16.msra.mxu0 %v1140
          %1158 = vmatprep.subr.bf16.mxu0 0
          %1159 = vmatpush1.bf16.msra.mxu0 %v1141
          %1160 = vmatprep.subr.bf16.mxu0 0
          %1161 = vmatpush1.bf16.msra.mxu0 %v1142
          %1162 = vmatprep.subr.bf16.mxu0 0
          %1163 = vmatpush1.bf16.msra.mxu0 %v1143
          %1164 = vmatprep.subr.bf16.mxu0 0
          %1165 = vmatpush1.bf16.msra.mxu0 %v1144
          %1166 = vmatprep.subr.bf16.mxu0 0
          %1167 = vmatpush1.bf16.msra.mxu0 %v1145
          %1168 = vmatprep.subr.bf16.mxu0 0
          %1169 = vmatpush1.bf16.msra.mxu0 %v1146
          %1170 = vmatprep.subr.bf16.mxu0 0
          %1171 = vmatpush1.bf16.msra.mxu0 %v1147
          %1172 = vmatprep.subr.bf16.mxu0 0
          %1173 = vmatpush1.bf16.msra.mxu0 0
          %1174 = vmatprep.subr.bf16.mxu0 0
          %1175 = vmatpush1.bf16.msra.mxu0 0
          %1176 = vmatprep.subr.bf16.mxu0 0
          %1177 = vmatpush1.bf16.msra.mxu0 0
          %1178 = vmatprep.subr.bf16.mxu0 0
          %1179 = vmatpush1.bf16.msra.mxu0 0
          %1180 = vmatprep.subr.bf16.mxu0 0
          %1181 = vmatpush1.bf16.msra.mxu0 0
          %1182 = vmatprep.subr.bf16.mxu0 0
          %1183 = vmatpush1.bf16.msra.mxu0 0
          %1184 = vmatprep.subr.bf16.mxu0 0
          %1185 = vmatpush1.bf16.msra.mxu0 0
          %1186 = vmatprep.subr.bf16.mxu0 0
          %1187 = vmatpush1.bf16.msra.mxu0 0
          %1188 = vmatprep.mubr.bf16.mxu0 0
          %1189 = vmatmul.mubr.bf16.gmra.mrb[0].mxu0 %v1084
          %v1190 = vpop.f32.mrb[0].mxu0
          %v1191 = vadd.f32 %v1106, %v1190
          %v1192 = vpop.f32.mrb[0].mxu0
          %v1193 = vpop.f32.mrb[0].mxu0
          %v1194 = vadd.f32 %v1106, %v1193
          %v1195 = vpop.f32.mrb[0].mxu0
          %1196 = vdwg.mxu0
          %v1197 = vmax.f32 %v1191, 0.0
          %v1198 = vmax.f32 %v1194, 0.0
          %v1199 = vlaneseq
          %v1200 = vand.u32 %v1199, 127
          %vm1201 = vcmp.lt.s32.totalorder %v1200, 8
          %v1202 = vsel %vm1201, %v1197, -1e+30
          %v1203 = vsel %vm1201, %v1198, -1e+30
          %1204 = vmax.xlane.f32.xlu0 %v1202
          %v1205 = vpop.xlane.xlu0 %1204
          %1206 = vmax.xlane.f32.xlu0 %v1203
          %v1207 = vpop.xlane.xlu0 %1206
          %v1208 = vsub.f32 %v1202, %v1205
          %v1209 = vsub.f32 %v1203, %v1207
          %v1210 = vmul.f32 %v1208, 1.442695
          %v1211 = vpow.pop %v1210
          %v1212 = vmul.f32 %v1209, 1.442695
          %v1213 = vpow.pop %v1212
          %1214 = vadd.xlane.f32.xlu0 %v1211
          %v1215 = vpop.xlane.xlu0 %1214
          %1216 = vadd.xlane.f32.xlu0 %v1213
          %v1217 = vpop.xlane.xlu0 %1216
          %v1218 = vlog2.pop %v1215
          %v1219 = vmul.f32 %v1218, 0.6931472
          %v1220 = vlog2.pop %v1217
          %v1221 = vmul.f32 %v1220, 0.6931472
          %v1222 = vadd.f32 %v1219, %v1205
          %v1223 = vadd.f32 %v1221, %v1207
          %v1224 = vsub.f32 %v1197, %v1222
          %v1225 = vsub.f32 %v1198, %v1223
          %1226 = vst [vmem:[#allocation22] sm:$0xff] %v1224
          %1227 = vst [vmem:[#allocation22 + $0x8] sm:$0xff] %v1225
        $region114: #{tpu_custom_call.1} parent=67 // pred_fallthru
          _
        // Predicated region
        $region129: #{tpu_custom_call.1} parent=67 // pred_check
          %p1228 = pneg %p321
        $region130: #{tpu_custom_call.1} parent=67 // pred_check_branch
          %1230 = sbr.rel (%p1228) target = $region132
        $region131: #{tpu_custom_call.1} parent=67 // pred_region
          %s1232 = ssub.s32 256, 256
          %1233 = vsyncadd [#allocation12], %s1232
          %s1234 = sshll.u32 [#allocation22], 4
          %s1235 = int_to_ptr.vmem [resolvable:$true] %s1234
          %1240 = dma.vmem_to_hbm [thread:$0]  %s1235, 256, %s16, [#allocation12], 128, 128, 8
        $region132: #{tpu_custom_call.1} parent=67 // pred_fallthru
          _
        // Predicated region
        $region133: #{tpu_custom_call.1} parent=67 // pred_check
          %p1241 = pneg %p321
        $region134: #{tpu_custom_call.1} parent=67 // pred_check_branch
          %1243 = sbr.rel (%p1241) target = $region136
        $region135: #{tpu_custom_call.1} parent=67 // pred_region
          %1244 = dma.done [#allocation12], 256
        $region136: #{tpu_custom_call.1} parent=67 // pred_fallthru
          _
      $region68: #{tpu_custom_call.1} parent=5 // pred_fallthru
        _
      %p1245 = scmp.le.s32.totalorder 2, %s41
      // Predicated region
      $region137: #{tpu_custom_call.1} parent=5 // pred_check
        %p1246 = pneg %p1245
      $region138: #{tpu_custom_call.1} parent=5 // pred_check_branch
        %1248 = sbr.rel (%p1246) target = $region140
      $region139: #{tpu_custom_call.1} parent=5 // pred_region
        %s1249 = ssub.s32 %s41, 2
      $region140: #{tpu_custom_call.1} parent=5 // pred_fallthru
        _
    $region6: #{tpu_custom_call.1} parent=1 // loop_footer
      %s45 = sadd.s32 1, %s41
    $region7: #{tpu_custom_call.1} parent=1 // loop_footer_branch
      %40 = sbr.rel target = $region3
    $region8: #{tpu_custom_call.1} parent=1 // loop_exit
      _
    %1250 = vsyncpa [#allocation11], 1
    %s1251 = scalar_lea.sflag [#allocation11], 1
    %1252 = vsyncpa %s1251, 1
    %1253 = vsyncpa [#allocation14], 1
    %1254 = vsyncpa [#allocation17], 1
    %1255 = vsyncpa [#allocation20], 1
    %1256 = vsyncpa [#allocation12], 1
    %s1257 = scalar_lea.sflag [#allocation12], 1
    %1258 = vsyncpa %s1257, 1

</llo_original>
